<compile_context>
chip_gen: v7x
topology: tpu7x:2x2x1
jax: 0.10.0
libtpu: 0.0.40
codegen_flags: <defaults>
</compile_context>

<pallas_src>
import functools

import jax
import jax.numpy as jnp
from jax.experimental import pallas as pl
from jax.experimental.pallas import tpu as pltpu


# ---------------------------------------------------------------------------
# Fused kernel: one grid step = TT timesteps of
#     h = tanh(x_t @ W_ih^T + (b_ih + b_hh) + h @ W_hh^T)
# plus (on the last grid step only) out = h_T @ W_fc^T + b_fc.
# ---------------------------------------------------------------------------
def fused_rnn_kernel(x_ref, wih_t_ref, whh_t_ref, bias_ref, wfc_t_ref, bfc_ref,
                     out_ref, h_ref, *, seq_len, mask_tail):
    blk = pl.program_id(0)
    B, TT, _ = x_ref.shape
    H = h_ref.shape[-1]

    @pl.when(blk == 0)
    def _():
        h_ref[...] = jnp.zeros_like(h_ref)

    # Hoist loop-invariant loads / broadcasts out of the unrolled loop.
    # TODO(synk): for very large H, stream W_hh from the ref inside the loop
    # (and/or lower TT / the unroll factor) if the bundle dump shows spills.
    wih_t = wih_t_ref[...]                      # (I, H)
    whh_t = whh_t_ref[...]                      # (H, H)
    bias = jnp.broadcast_to(bias_ref[...], (B, H))
    h0 = h_ref[...]                             # (B, H) resident hidden state
    t0 = blk * TT

    def step(i, h):
        x_t = x_ref[:, i, :]                    # (B, I) dynamic sublane read
        # Projection matmul is independent of h -> hides in MXU slack of the
        # latency-bound recurrence chain (matmul -> add -> tanh on EUP).
        h_new = jnp.tanh(
            jnp.dot(x_t, wih_t, preferred_element_type=jnp.float32)
            + bias
            + jnp.dot(h, whh_t, preferred_element_type=jnp.float32)
        )
        if mask_tail:                           # static: only for partial tail block
            h_new = jnp.where(t0 + i < seq_len, h_new, h)
        return h_new

    h_last = jax.lax.fori_loop(0, TT, step, h0, unroll=True)
    h_ref[...] = h_last

    # Final Linear fused into the same kernel, last grid step only.
    @pl.when(blk == pl.num_programs(0) - 1)
    def _():
        out_ref[...] = (
            jnp.dot(h_last, wfc_t_ref[...], preferred_element_type=jnp.float32)
            + bfc_ref[...]
        ).astype(out_ref.dtype)


def rnn_forward(x, w_ih, w_hh, b_ih, b_hh, w_fc, b_fc):
    """x: (B, T, I) float32 (batch_first), matching the PyTorch module."""
    B, T, I = x.shape
    H = w_hh.shape[0]
    O = w_fc.shape[0]
    f32 = jnp.float32

    # Timesteps per grid step: full T if small (block dim == full dim is always
    # legal), else 32-step sublane-aligned blocks; partial tail block masked.
    TT = T if T <= 32 else 32
    n_blocks = pl.cdiv(T, TT)
    mask_tail = (T % TT) != 0

    # Pre-transposed weights (no in-kernel transposes); RNN biases pre-summed.
    wih_t = w_ih.T.astype(f32)                   # (I, H)
    whh_t = w_hh.T.astype(f32)                   # (H, H)
    wfc_t = w_fc.T.astype(f32)                   # (H, O)
    bias = (b_ih + b_hh).astype(f32).reshape(1, H)
    bfc = b_fc.astype(f32).reshape(1, O)

    # Grid-invariant weights: single-buffered (halves their VMEM footprint).
    def _const_spec(shape):
        idx = lambda t, _n=len(shape): (0,) * _n
        try:
            return pl.BlockSpec(shape, idx, pipeline_mode=pl.Buffered(1))
        except (TypeError, AttributeError):      # older jax w/o pipeline_mode
            return pl.BlockSpec(shape, idx)

    grid_spec = pltpu.PrefetchScalarGridSpec(
        num_scalar_prefetch=0,
        grid=(n_blocks,),
        in_specs=[
            pl.BlockSpec((B, TT, I), lambda t: (0, t, 0)),   # x time-block
            _const_spec((I, H)),                              # W_ih^T
            _const_spec((H, H)),                              # W_hh^T
            _const_spec((1, H)),                              # b_ih + b_hh
            _const_spec((H, O)),                              # W_fc^T
            _const_spec((1, O)),                              # b_fc
        ],
        out_specs=pl.BlockSpec((B, O), lambda t: (0, 0)),
        scratch_shapes=[pltpu.VMEM((B, H), f32)],             # resident hidden state
    )

    # TODO(synk): on v6e/v7x, casting MXU operands to bf16 (f32 accumulate and
    #   tanh) gives ~3x MXU throughput / halves weight VMEM but breaks the
    #   1e-5 f32 tolerance used below, so it is not enabled here.
    # TODO(synk): on v7x with B >= 16, add a leading "parallel" batch-block
    #   grid axis so both TensorCores each carry part of the hidden state;
    #   also set vmem_limit_bytes explicitly for large H under 64 MiB VMEM.
    return pl.pallas_call(
        functools.partial(fused_rnn_kernel, seq_len=T, mask_tail=mask_tail),
        out_shape=jax.ShapeDtypeStruct((B, O), f32),
        grid_spec=grid_spec,
        compiler_params=pltpu.CompilerParams(
            dimension_semantics=("arbitrary",),   # true time recurrence
        ),
    )(x.astype(f32), wih_t, whh_t, bias, wfc_t, bfc)


def rnn_reference(x, w_ih, w_hh, b_ih, b_hh, w_fc, b_fc):
    B, T, I = x.shape
    H = w_hh.shape[0]
    h = jnp.zeros((B, H), jnp.float32)
    for t in range(T):
        h = jnp.tanh(x[:, t, :] @ w_ih.T + b_ih + h @ w_hh.T + b_hh)
    return h @ w_fc.T + b_fc


if __name__ == "__main__":
    # Small shapes consistent with the module's forward.
    B, T = 2, 8            # batch, sequence length
    I, H, O = 16, 32, 8    # input_size, hidden_size, output_size

    key = jax.random.PRNGKey(0)
    kx, k1, k2, k3, k4, k5, k6 = jax.random.split(key, 7)

    # PyTorch-style uniform(-1/sqrt(H), 1/sqrt(H)) init, deterministic.
    bound = 1.0 / jnp.sqrt(jnp.float32(H))
    u = lambda k, shape: jax.random.uniform(k, shape, jnp.float32, -bound, bound)

    x = jax.random.normal(kx, (B, T, I), jnp.float32)
    w_ih = u(k1, (H, I))
    w_hh = u(k2, (H, H))
    b_ih = u(k3, (H,))
    b_hh = u(k4, (H,))
    w_fc = u(k5, (O, H))
    b_fc = u(k6, (O,))

    out = jax.block_until_ready(
        jax.jit(rnn_forward)(x, w_ih, w_hh, b_ih, b_hh, w_fc, b_fc))
    ref = rnn_reference(x, w_ih, w_hh, b_ih, b_hh, w_fc, b_fc)

    assert out.shape == (B, O)
    assert jnp.allclose(out, ref, atol=1e-5, rtol=1e-5), "mismatch vs reference"
    print("KERNEL_OK")
</pallas_src>

<mosaic_0001>
module attributes {stable_mosaic.version = 11 : i64} {
  func.func @fused_rnn_kernel(%arg0: i32, %arg1: memref<2x8x16xf32, #tpu.memory_space<vmem>>, %arg2: memref<16x32xf32, #tpu.memory_space<vmem>>, %arg3: memref<32x32xf32, #tpu.memory_space<vmem>>, %arg4: memref<1x32xf32, #tpu.memory_space<vmem>>, %arg5: memref<32x8xf32, #tpu.memory_space<vmem>>, %arg6: memref<1x8xf32, #tpu.memory_space<vmem>>, %arg7: memref<2x8xf32, #tpu.memory_space<vmem>>, %arg8: memref<2x32xf32, #tpu.memory_space<vmem>>) attributes {dimension_semantics = [#tpu.dimension_semantics<arbitrary>], iteration_bounds = array<i64: 1>, scalar_prefetch = 0 : i64, scratch_operands = 1 : i64, tpu.core_type = #tpu.core_type<tc>, window_params = [{transform_indices = @transform_0, window_bounds = array<i64: 2, 8, 16>}, {pipeline_mode = #tpu.pipeline_mode<synchronous>, transform_indices = @transform_1, window_bounds = array<i64: 16, 32>}, {pipeline_mode = #tpu.pipeline_mode<synchronous>, transform_indices = @transform_2, window_bounds = array<i64: 32, 32>}, {pipeline_mode = #tpu.pipeline_mode<synchronous>, transform_indices = @transform_3, window_bounds = array<i64: 1, 32>}, {pipeline_mode = #tpu.pipeline_mode<synchronous>, transform_indices = @transform_4, window_bounds = array<i64: 32, 8>}, {pipeline_mode = #tpu.pipeline_mode<synchronous>, transform_indices = @transform_5, window_bounds = array<i64: 1, 8>}, {pipeline_mode = #tpu.pipeline_mode<synchronous>, transform_indices = @transform_6, window_bounds = array<i64: 2, 8>}]} {
    %c0_i32 = arith.constant 0 : i32
    %0 = arith.cmpi eq, %arg0, %c0_i32 : i32
    %1 = arith.extui %0 : i1 to i32
    %c0_i32_0 = arith.constant 0 : i32
    %2 = arith.cmpi ne, %1, %c0_i32_0 : i32
    scf.if %2 {
      %cst_44 = arith.constant 0.000000e+00 : f32
      %77 = vector.broadcast %cst_44 : f32 to vector<2x32xf32>
      %c0_45 = arith.constant 0 : index
      %c0_46 = arith.constant 0 : index
      %78 = vector.load %arg8[%c0_45, %c0_46] : memref<2x32xf32, #tpu.memory_space<vmem>>, vector<2x32xf32>
      tpu.vector_store %arg8[%c0_45, %c0_46], %77 {strides = array<i32>} : memref<2x32xf32, #tpu.memory_space<vmem>>, vector<2x32xf32>,
    } else {
    }
    %c0 = arith.constant 0 : index
    %c0_1 = arith.constant 0 : index
    %3 = vector.load %arg2[%c0, %c0_1] : memref<16x32xf32, #tpu.memory_space<vmem>>, vector<16x32xf32>
    %c0_2 = arith.constant 0 : index
    %c0_3 = arith.constant 0 : index
    %4 = vector.load %arg3[%c0_2, %c0_3] : memref<32x32xf32, #tpu.memory_space<vmem>>, vector<32x32xf32>
    %c0_4 = arith.constant 0 : index
    %c0_5 = arith.constant 0 : index
    %5 = vector.load %arg4[%c0_4, %c0_5] : memref<1x32xf32, #tpu.memory_space<vmem>>, vector<1x32xf32>
    %6 = vector.shape_cast %5 : vector<1x32xf32> to vector<1x32xf32>
    %7 = vector.broadcast %6 : vector<1x32xf32> to vector<2x32xf32>
    %c0_6 = arith.constant 0 : index
    %c0_7 = arith.constant 0 : index
    %8 = vector.load %arg8[%c0_6, %c0_7] : memref<2x32xf32, #tpu.memory_space<vmem>>, vector<2x32xf32>
    %c0_i32_8 = arith.constant 0 : i32
    %c0_9 = arith.constant 0 : index
    %9 = arith.index_cast %c0_i32_8 : i32 to index
    %c0_10 = arith.constant 0 : index
    %10 = vector.load %arg1[%c0_9, %9, %c0_10] : memref<2x8x16xf32, #tpu.memory_space<vmem>>, vector<2x1x16xf32>
    %11 = vector.shape_cast %10 : vector<2x1x16xf32> to vector<2x16xf32>
    %cst = arith.constant dense<0.000000e+00> : vector<2x32xf32>
    %12 = tpu.matmul %11, %3, %cst {dimension_numbers = #tpu.dot_dimension_numbers<[1], [0], [0], [1], [0, 0, 1, 1], [], []>} : vector<2x16xf32>, vector<16x32xf32>, vector<2x32xf32> -> vector<2x32xf32>
    %13 = arith.addf %12, %7 : vector<2x32xf32>
    %cst_11 = arith.constant dense<0.000000e+00> : vector<2x32xf32>
    %14 = tpu.matmul %8, %4, %cst_11 {dimension_numbers = #tpu.dot_dimension_numbers<[1], [0], [0], [1], [0, 0, 1, 1], [], []>} : vector<2x32xf32>, vector<32x32xf32>, vector<2x32xf32> -> vector<2x32xf32>
    %15 = arith.addf %13, %14 : vector<2x32xf32>
    %16 = math.tanh %15 : vector<2x32xf32>
    %c1_i32 = arith.constant 1 : i32
    %c0_12 = arith.constant 0 : index
    %17 = arith.index_cast %c1_i32 : i32 to index
    %c0_13 = arith.constant 0 : index
    %18 = vector.load %arg1[%c0_12, %17, %c0_13] : memref<2x8x16xf32, #tpu.memory_space<vmem>>, vector<2x1x16xf32>
    %19 = vector.shape_cast %18 : vector<2x1x16xf32> to vector<2x16xf32>
    %cst_14 = arith.constant dense<0.000000e+00> : vector<2x32xf32>
    %20 = tpu.matmul %19, %3, %cst_14 {dimension_numbers = #tpu.dot_dimension_numbers<[1], [0], [0], [1], [0, 0, 1, 1], [], []>} : vector<2x16xf32>, vector<16x32xf32>, vector<2x32xf32> -> vector<2x32xf32>
    %21 = arith.addf %20, %7 : vector<2x32xf32>
    %cst_15 = arith.constant dense<0.000000e+00> : vector<2x32xf32>
    %22 = tpu.matmul %16, %4, %cst_15 {dimension_numbers = #tpu.dot_dimension_numbers<[1], [0], [0], [1], [0, 0, 1, 1], [], []>} : vector<2x32xf32>, vector<32x32xf32>, vector<2x32xf32> -> vector<2x32xf32>
    %23 = arith.addf %21, %22 : vector<2x32xf32>
    %24 = math.tanh %23 : vector<2x32xf32>
    %c2_i32 = arith.constant 2 : i32
    %c0_16 = arith.constant 0 : index
    %25 = arith.index_cast %c2_i32 : i32 to index
    %c0_17 = arith.constant 0 : index
    %26 = vector.load %arg1[%c0_16, %25, %c0_17] : memref<2x8x16xf32, #tpu.memory_space<vmem>>, vector<2x1x16xf32>
    %27 = vector.shape_cast %26 : vector<2x1x16xf32> to vector<2x16xf32>
    %cst_18 = arith.constant dense<0.000000e+00> : vector<2x32xf32>
    %28 = tpu.matmul %27, %3, %cst_18 {dimension_numbers = #tpu.dot_dimension_numbers<[1], [0], [0], [1], [0, 0, 1, 1], [], []>} : vector<2x16xf32>, vector<16x32xf32>, vector<2x32xf32> -> vector<2x32xf32>
    %29 = arith.addf %28, %7 : vector<2x32xf32>
    %cst_19 = arith.constant dense<0.000000e+00> : vector<2x32xf32>
    %30 = tpu.matmul %24, %4, %cst_19 {dimension_numbers = #tpu.dot_dimension_numbers<[1], [0], [0], [1], [0, 0, 1, 1], [], []>} : vector<2x32xf32>, vector<32x32xf32>, vector<2x32xf32> -> vector<2x32xf32>
    %31 = arith.addf %29, %30 : vector<2x32xf32>
    %32 = math.tanh %31 : vector<2x32xf32>
    %c3_i32 = arith.constant 3 : i32
    %c0_20 = arith.constant 0 : index
    %33 = arith.index_cast %c3_i32 : i32 to index
    %c0_21 = arith.constant 0 : index
    %34 = vector.load %arg1[%c0_20, %33, %c0_21] : memref<2x8x16xf32, #tpu.memory_space<vmem>>, vector<2x1x16xf32>
    %35 = vector.shape_cast %34 : vector<2x1x16xf32> to vector<2x16xf32>
    %cst_22 = arith.constant dense<0.000000e+00> : vector<2x32xf32>
    %36 = tpu.matmul %35, %3, %cst_22 {dimension_numbers = #tpu.dot_dimension_numbers<[1], [0], [0], [1], [0, 0, 1, 1], [], []>} : vector<2x16xf32>, vector<16x32xf32>, vector<2x32xf32> -> vector<2x32xf32>
    %37 = arith.addf %36, %7 : vector<2x32xf32>
    %cst_23 = arith.constant dense<0.000000e+00> : vector<2x32xf32>
    %38 = tpu.matmul %32, %4, %cst_23 {dimension_numbers = #tpu.dot_dimension_numbers<[1], [0], [0], [1], [0, 0, 1, 1], [], []>} : vector<2x32xf32>, vector<32x32xf32>, vector<2x32xf32> -> vector<2x32xf32>
    %39 = arith.addf %37, %38 : vector<2x32xf32>
    %40 = math.tanh %39 : vector<2x32xf32>
    %c4_i32 = arith.constant 4 : i32
    %c0_24 = arith.constant 0 : index
    %41 = arith.index_cast %c4_i32 : i32 to index
    %c0_25 = arith.constant 0 : index
    %42 = vector.load %arg1[%c0_24, %41, %c0_25] : memref<2x8x16xf32, #tpu.memory_space<vmem>>, vector<2x1x16xf32>
    %43 = vector.shape_cast %42 : vector<2x1x16xf32> to vector<2x16xf32>
    %cst_26 = arith.constant dense<0.000000e+00> : vector<2x32xf32>
    %44 = tpu.matmul %43, %3, %cst_26 {dimension_numbers = #tpu.dot_dimension_numbers<[1], [0], [0], [1], [0, 0, 1, 1], [], []>} : vector<2x16xf32>, vector<16x32xf32>, vector<2x32xf32> -> vector<2x32xf32>
    %45 = arith.addf %44, %7 : vector<2x32xf32>
    %cst_27 = arith.constant dense<0.000000e+00> : vector<2x32xf32>
    %46 = tpu.matmul %40, %4, %cst_27 {dimension_numbers = #tpu.dot_dimension_numbers<[1], [0], [0], [1], [0, 0, 1, 1], [], []>} : vector<2x32xf32>, vector<32x32xf32>, vector<2x32xf32> -> vector<2x32xf32>
    %47 = arith.addf %45, %46 : vector<2x32xf32>
    %48 = math.tanh %47 : vector<2x32xf32>
    %c5_i32 = arith.constant 5 : i32
    %c0_28 = arith.constant 0 : index
    %49 = arith.index_cast %c5_i32 : i32 to index
    %c0_29 = arith.constant 0 : index
    %50 = vector.load %arg1[%c0_28, %49, %c0_29] : memref<2x8x16xf32, #tpu.memory_space<vmem>>, vector<2x1x16xf32>
    %51 = vector.shape_cast %50 : vector<2x1x16xf32> to vector<2x16xf32>
    %cst_30 = arith.constant dense<0.000000e+00> : vector<2x32xf32>
    %52 = tpu.matmul %51, %3, %cst_30 {dimension_numbers = #tpu.dot_dimension_numbers<[1], [0], [0], [1], [0, 0, 1, 1], [], []>} : vector<2x16xf32>, vector<16x32xf32>, vector<2x32xf32> -> vector<2x32xf32>
    %53 = arith.addf %52, %7 : vector<2x32xf32>
    %cst_31 = arith.constant dense<0.000000e+00> : vector<2x32xf32>
    %54 = tpu.matmul %48, %4, %cst_31 {dimension_numbers = #tpu.dot_dimension_numbers<[1], [0], [0], [1], [0, 0, 1, 1], [], []>} : vector<2x32xf32>, vector<32x32xf32>, vector<2x32xf32> -> vector<2x32xf32>
    %55 = arith.addf %53, %54 : vector<2x32xf32>
    %56 = math.tanh %55 : vector<2x32xf32>
    %c6_i32 = arith.constant 6 : i32
    %c0_32 = arith.constant 0 : index
    %57 = arith.index_cast %c6_i32 : i32 to index
    %c0_33 = arith.constant 0 : index
    %58 = vector.load %arg1[%c0_32, %57, %c0_33] : memref<2x8x16xf32, #tpu.memory_space<vmem>>, vector<2x1x16xf32>
    %59 = vector.shape_cast %58 : vector<2x1x16xf32> to vector<2x16xf32>
    %cst_34 = arith.constant dense<0.000000e+00> : vector<2x32xf32>
    %60 = tpu.matmul %59, %3, %cst_34 {dimension_numbers = #tpu.dot_dimension_numbers<[1], [0], [0], [1], [0, 0, 1, 1], [], []>} : vector<2x16xf32>, vector<16x32xf32>, vector<2x32xf32> -> vector<2x32xf32>
    %61 = arith.addf %60, %7 : vector<2x32xf32>
    %cst_35 = arith.constant dense<0.000000e+00> : vector<2x32xf32>
    %62 = tpu.matmul %56, %4, %cst_35 {dimension_numbers = #tpu.dot_dimension_numbers<[1], [0], [0], [1], [0, 0, 1, 1], [], []>} : vector<2x32xf32>, vector<32x32xf32>, vector<2x32xf32> -> vector<2x32xf32>
    %63 = arith.addf %61, %62 : vector<2x32xf32>
    %64 = math.tanh %63 : vector<2x32xf32>
    %c7_i32 = arith.constant 7 : i32
    %c0_36 = arith.constant 0 : index
    %65 = arith.index_cast %c7_i32 : i32 to index
    %c0_37 = arith.constant 0 : index
    %66 = vector.load %arg1[%c0_36, %65, %c0_37] : memref<2x8x16xf32, #tpu.memory_space<vmem>>, vector<2x1x16xf32>
    %67 = vector.shape_cast %66 : vector<2x1x16xf32> to vector<2x16xf32>
    %cst_38 = arith.constant dense<0.000000e+00> : vector<2x32xf32>
    %68 = tpu.matmul %67, %3, %cst_38 {dimension_numbers = #tpu.dot_dimension_numbers<[1], [0], [0], [1], [0, 0, 1, 1], [], []>} : vector<2x16xf32>, vector<16x32xf32>, vector<2x32xf32> -> vector<2x32xf32>
    %69 = arith.addf %68, %7 : vector<2x32xf32>
    %cst_39 = arith.constant dense<0.000000e+00> : vector<2x32xf32>
    %70 = tpu.matmul %64, %4, %cst_39 {dimension_numbers = #tpu.dot_dimension_numbers<[1], [0], [0], [1], [0, 0, 1, 1], [], []>} : vector<2x32xf32>, vector<32x32xf32>, vector<2x32xf32> -> vector<2x32xf32>
    %71 = arith.addf %69, %70 : vector<2x32xf32>
    %72 = math.tanh %71 : vector<2x32xf32>
    %c8_i32 = arith.constant 8 : i32
    %c0_40 = arith.constant 0 : index
    %c0_41 = arith.constant 0 : index
    %73 = vector.load %arg8[%c0_40, %c0_41] : memref<2x32xf32, #tpu.memory_space<vmem>>, vector<2x32xf32>
    tpu.vector_store %arg8[%c0_40, %c0_41], %72 {strides = array<i32>} : memref<2x32xf32, #tpu.memory_space<vmem>>, vector<2x32xf32>,
    %c0_i32_42 = arith.constant 0 : i32
    %74 = arith.cmpi eq, %arg0, %c0_i32_42 : i32
    %75 = arith.extui %74 : i1 to i32
    %c0_i32_43 = arith.constant 0 : i32
    %76 = arith.cmpi ne, %75, %c0_i32_43 : i32
    scf.if %76 {
      %c0_44 = arith.constant 0 : index
      %c0_45 = arith.constant 0 : index
      %77 = vector.load %arg5[%c0_44, %c0_45] : memref<32x8xf32, #tpu.memory_space<vmem>>, vector<32x8xf32>
      %cst_46 = arith.constant dense<0.000000e+00> : vector<2x8xf32>
      %78 = tpu.matmul %72, %77, %cst_46 {dimension_numbers = #tpu.dot_dimension_numbers<[1], [0], [0], [1], [0, 0, 1, 1], [], []>} : vector<2x32xf32>, vector<32x8xf32>, vector<2x8xf32> -> vector<2x8xf32>
      %c0_47 = arith.constant 0 : index
      %c0_48 = arith.constant 0 : index
      %79 = vector.load %arg6[%c0_47, %c0_48] : memref<1x8xf32, #tpu.memory_space<vmem>>, vector<1x8xf32>
      %80 = vector.broadcast %79 : vector<1x8xf32> to vector<2x8xf32>
      %81 = arith.addf %78, %80 : vector<2x8xf32>
      %c0_49 = arith.constant 0 : index
      %c0_50 = arith.constant 0 : index
      %82 = vector.load %arg7[%c0_49, %c0_50] : memref<2x8xf32, #tpu.memory_space<vmem>>, vector<2x8xf32>
      tpu.vector_store %arg7[%c0_49, %c0_50], %81 {strides = array<i32>} : memref<2x8xf32, #tpu.memory_space<vmem>>, vector<2x8xf32>,
    } else {
    }
    return
  }
  func.func @transform_0(%arg0: i32) -> (i32, i32, i32) {
    %c0_i32 = arith.constant 0 : i32
    %c0_i32_0 = arith.constant 0 : i32
    %c0_i32_1 = arith.constant 0 : i32
    return %c0_i32, %arg0, %c0_i32_0 : i32, i32, i32
  }
  func.func @transform_1(%arg0: i32) -> (i32, i32) {
    %c0_i32 = arith.constant 0 : i32
    %c0_i32_0 = arith.constant 0 : i32
    %c0_i32_1 = arith.constant 0 : i32
    return %c0_i32, %c0_i32_0 : i32, i32
  }
  func.func @transform_2(%arg0: i32) -> (i32, i32) {
    %c0_i32 = arith.constant 0 : i32
    %c0_i32_0 = arith.constant 0 : i32
    %c0_i32_1 = arith.constant 0 : i32
    return %c0_i32, %c0_i32_0 : i32, i32
  }
  func.func @transform_3(%arg0: i32) -> (i32, i32) {
    %c0_i32 = arith.constant 0 : i32
    %c0_i32_0 = arith.constant 0 : i32
    %c0_i32_1 = arith.constant 0 : i32
    return %c0_i32, %c0_i32_0 : i32, i32
  }
  func.func @transform_4(%arg0: i32) -> (i32, i32) {
    %c0_i32 = arith.constant 0 : i32
    %c0_i32_0 = arith.constant 0 : i32
    %c0_i32_1 = arith.constant 0 : i32
    return %c0_i32, %c0_i32_0 : i32, i32
  }
  func.func @transform_5(%arg0: i32) -> (i32, i32) {
    %c0_i32 = arith.constant 0 : i32
    %c0_i32_0 = arith.constant 0 : i32
    %c0_i32_1 = arith.constant 0 : i32
    return %c0_i32, %c0_i32_0 : i32, i32
  }
  func.func @transform_6(%arg0: i32) -> (i32, i32) {
    %c0_i32 = arith.constant 0 : i32
    %c0_i32_0 = arith.constant 0 : i32
    %c0_i32_1 = arith.constant 0 : i32
    return %c0_i32, %c0_i32_0 : i32, i32
  }
}

</mosaic_0001>

<llo_original>
// kernel: rnn_forward.1
$region0: #{rnn_forward.1}
  #allocation0 [shape = 'u32[]', space=smem, size = 0x4, offset = 0x4, fixed_abs, tag = 'smem constant byte address 0x4 - core index']
  #allocation1 [shape = 'u32[144,128]{1,0:T(1,128)}', space=vmem, size = 0x12000, scoped, tag = 'internal scratch']
  #allocation2 [shape = 'f32[2,32]{1,0:T(2,128)}', space=vmem, size = 0x400, scoped, tag = 'scratch operand']
  %s0 = inlined_call_operand.vmem [shape: f32[2,8,16], index: 0, kind: input, shape index: {}]
  %s1 = inlined_call_operand.vmem [shape: f32[16,32], index: 1, kind: input, shape index: {}]
  %s2 = inlined_call_operand.vmem [shape: f32[32,32], index: 2, kind: input, shape index: {}]
  %s3 = inlined_call_operand.vmem [shape: f32[1,32], index: 3, kind: input, shape index: {}]
  %s4 = inlined_call_operand.vmem [shape: f32[32,8], index: 4, kind: input, shape index: {}]
  %s5 = inlined_call_operand.vmem [shape: f32[1,8], index: 5, kind: input, shape index: {}]
  %s6 = inlined_call_operand.hbm [shape: f32[2,8], index: 6, kind: output, shape index: {}]
  %s7 = sld [smem:[#allocation0]]
  $region42: #{rnn_forward.1} parent=0
    _
  %s9 = ssub.s32 1, %s7
  %s10 = scalar_select 0, %s9, %s7
  $region1: #{rnn_forward.1} parent=0
    #allocation3 [shape = 'u8[1024]{0}', space=vmem, size = 0x400, scoped, tag = 'output window, operand 0, single buffered']
    #allocation4 [shape = 's32[1]{0}', space=sflag, size = 0x4, scoped, tag = 'scoped memory for rnn_forward.1']
    %11 = vsyncpa [#allocation4], 0
    // Predicated region
    $region2: #{rnn_forward.1} parent=1 // pred_check
      _
    $region3: #{rnn_forward.1} parent=1 // pred_check_branch
      %13 = sbr.rel (0) target = $region5
    $region4: #{rnn_forward.1} parent=1 // pred_region
      _
    $region5: #{rnn_forward.1} parent=1 // pred_fallthru
      _
    // Predicated region
    $region6: #{rnn_forward.1} parent=1 // pred_check
      _
    $region7: #{rnn_forward.1} parent=1 // pred_check_branch
      %15 = sbr.rel (0) target = $region9
    $region8: #{rnn_forward.1} parent=1 // pred_region
      _
    $region9: #{rnn_forward.1} parent=1 // pred_fallthru
      _
    // Predicated region
    $region10: #{rnn_forward.1} parent=1 // pred_check
      _
    $region11: #{rnn_forward.1} parent=1 // pred_check_branch
      %17 = sbr.rel (0) target = $region13
    $region12: #{rnn_forward.1} parent=1 // pred_region
      _
    $region13: #{rnn_forward.1} parent=1 // pred_fallthru
      _
    // Predicated region
    $region14: #{rnn_forward.1} parent=1 // pred_check
      _
    $region15: #{rnn_forward.1} parent=1 // pred_check_branch
      %19 = sbr.rel (0) target = $region17
    $region16: #{rnn_forward.1} parent=1 // pred_region
      _
    $region17: #{rnn_forward.1} parent=1 // pred_fallthru
      _
    // Predicated region
    $region18: #{rnn_forward.1} parent=1 // pred_check
      _
    $region19: #{rnn_forward.1} parent=1 // pred_check_branch
      %21 = sbr.rel (0) target = $region21
    $region20: #{rnn_forward.1} parent=1 // pred_region
      _
    $region21: #{rnn_forward.1} parent=1 // pred_fallthru
      _
    // Predicated region
    $region22: #{rnn_forward.1} parent=1 // pred_check
      _
    $region23: #{rnn_forward.1} parent=1 // pred_check_branch
      %23 = sbr.rel (0) target = $region25
    $region24: #{rnn_forward.1} parent=1 // pred_region
      _
    $region25: #{rnn_forward.1} parent=1 // pred_fallthru
      _
    %p24 = scmp.eq.s32.totalorder 0, 0
    // Predicated region
    $region26: #{rnn_forward.1} parent=1 // pred_check
      %p25 = pneg %p24
    $region27: #{rnn_forward.1} parent=1 // pred_check_branch
      %27 = sbr.rel (%p25) target = $region29
    $region28: #{rnn_forward.1} parent=1 // pred_region
      %vm28 = vcmask 254976
      %29 = vst.msk [vmem:[#allocation2] sm:$0x3] %vm28, 0.0
    $region29: #{rnn_forward.1} parent=1 // pred_fallthru
      _
    %v30 = vld [vmem:[%s1] sm:$0xff]
    %v31 = vld [vmem:[%s1 + $0x8] sm:$0xff]
    %v32 = vld [vmem:[%s2] sm:$0xff]
    %v33 = vld [vmem:[%s2 + $0x8] sm:$0xff]
    %v34 = vld [vmem:[%s2 + $0x10] sm:$0xff]
    %v35 = vld [vmem:[%s2 + $0x18] sm:$0xff]
    %v36 = vld [vmem:[%s3] sm:$0x1]
    %v38 = vlaneseq
    %v39 = vshrl.u32 %v38, 7
    %v40 = vsub.s32 0, %v39
    %v41 = vrot.slane %v36, %v40
    %v43 = vld [vmem:[#allocation2] sm:$0x3]
    %v44 = vld [vmem:[%s0] sm:$0x1]
    %v45 = vld [vmem:[%s0 + $0x8] sm:$0x1]
    %v48 = vrot.slane %v45, 7
    %vm49 = vcmask 1041409
    %v50 = vsel %vm49, %v48, %v44
    %vm51 = vcmask 130048
    %v52 = vsel %vm51, %v50, 0
    %54 = vmatprep.subr.mxu0 0.0
    %55 = vmatpush1.msra.mxu0 %v30
    %56 = vmatprep.subr.mxu0 0.0
    %57 = vmatpush1.msra.mxu0 %v31
    %58 = vmatprep.subr.mxu0 0.0
    %59 = vmatpush1.msra.mxu0 0.0
    %60 = vmatprep.subr.mxu0 0.0
    %61 = vmatpush1.msra.mxu0 0.0
    %62 = vmatprep.subr.mxu0 0.0
    %63 = vmatpush1.msra.mxu0 0.0
    %64 = vmatprep.subr.mxu0 0.0
    %65 = vmatpush1.msra.mxu0 0.0
    %66 = vmatprep.subr.mxu0 0.0
    %67 = vmatpush1.msra.mxu0 0.0
    %68 = vmatprep.subr.mxu0 0.0
    %69 = vmatpush1.msra.mxu0 0.0
    %70 = vmatprep.subr.mxu0 0.0
    %71 = vmatpush1.msra.mxu0 0.0
    %72 = vmatprep.subr.mxu0 0.0
    %73 = vmatpush1.msra.mxu0 0.0
    %74 = vmatprep.subr.mxu0 0.0
    %75 = vmatpush1.msra.mxu0 0.0
    %76 = vmatprep.subr.mxu0 0.0
    %77 = vmatpush1.msra.mxu0 0.0
    %78 = vmatprep.subr.mxu0 0.0
    %79 = vmatpush1.msra.mxu0 0.0
    %80 = vmatprep.subr.mxu0 0.0
    %81 = vmatpush1.msra.mxu0 0.0
    %82 = vmatprep.subr.mxu0 0.0
    %83 = vmatpush1.msra.mxu0 0.0
    %84 = vmatprep.subr.mxu0 0.0
    %85 = vmatpush1.msra.mxu0 0.0
    %86 = vmatprep.subr.mxu0 0.0
    %87 = vmatpush1.msra.mxu0 0.0
    %88 = vmatprep.subr.mxu0 0.0
    %89 = vmatpush1.msra.mxu0 0.0
    %90 = vmatprep.subr.mxu0 0.0
    %91 = vmatpush1.msra.mxu0 0.0
    %92 = vmatprep.subr.mxu0 0.0
    %93 = vmatpush1.msra.mxu0 0.0
    %94 = vmatprep.subr.mxu0 0.0
    %95 = vmatpush1.msra.mxu0 0.0
    %96 = vmatprep.subr.mxu0 0.0
    %97 = vmatpush1.msra.mxu0 0.0
    %98 = vmatprep.subr.mxu0 0.0
    %99 = vmatpush1.msra.mxu0 0.0
    %100 = vmatprep.subr.mxu0 0.0
    %101 = vmatpush1.msra.mxu0 0.0
    %102 = vmatprep.subr.mxu0 0.0
    %103 = vmatpush1.msra.mxu0 0.0
    %104 = vmatprep.subr.mxu0 0.0
    %105 = vmatpush1.msra.mxu0 0.0
    %106 = vmatprep.subr.mxu0 0.0
    %107 = vmatpush1.msra.mxu0 0.0
    %108 = vmatprep.subr.mxu0 0.0
    %109 = vmatpush1.msra.mxu0 0.0
    %110 = vmatprep.subr.mxu0 0.0
    %111 = vmatpush1.msra.mxu0 0.0
    %112 = vmatprep.subr.mxu0 0.0
    %113 = vmatpush1.msra.mxu0 0.0
    %114 = vmatprep.subr.mxu0 0.0
    %115 = vmatpush1.msra.mxu0 0.0
    %116 = vmatprep.subr.mxu0 0.0
    %117 = vmatpush1.msra.mxu0 0.0
    %118 = vmatprep.mubr.f32.mxu0 0.0
    %119 = vmatmul.mubr.f32.gmra.mrb[0].mxu0 %v52
    %v120 = vpop.f32.mrb[0].mxu0
    %v121 = vadd.f32 %v41, %v120
    %v122 = vpop.f32.mrb[0].mxu0
    %123 = vdwg.mxu0
    %vm124 = vcmask 261120
    %v126 = vsel %vm124, %v43, 0
    %128 = vmatprep.subr.mxu0 0.0
    %129 = vmatpush1.msra.mxu0 %v32
    %130 = vmatprep.subr.mxu0 0.0
    %131 = vmatpush1.msra.mxu0 %v33
    %132 = vmatprep.subr.mxu0 0.0
    %133 = vmatpush1.msra.mxu0 %v34
    %134 = vmatprep.subr.mxu0 0.0
    %135 = vmatpush1.msra.mxu0 %v35
    %136 = vmatprep.subr.mxu0 0.0
    %137 = vmatpush1.msra.mxu0 0.0
    %138 = vmatprep.subr.mxu0 0.0
    %139 = vmatpush1.msra.mxu0 0.0
    %140 = vmatprep.subr.mxu0 0.0
    %141 = vmatpush1.msra.mxu0 0.0
    %142 = vmatprep.subr.mxu0 0.0
    %143 = vmatpush1.msra.mxu0 0.0
    %144 = vmatprep.subr.mxu0 0.0
    %145 = vmatpush1.msra.mxu0 0.0
    %146 = vmatprep.subr.mxu0 0.0
    %147 = vmatpush1.msra.mxu0 0.0
    %148 = vmatprep.subr.mxu0 0.0
    %149 = vmatpush1.msra.mxu0 0.0
    %150 = vmatprep.subr.mxu0 0.0
    %151 = vmatpush1.msra.mxu0 0.0
    %152 = vmatprep.subr.mxu0 0.0
    %153 = vmatpush1.msra.mxu0 0.0
    %154 = vmatprep.subr.mxu0 0.0
    %155 = vmatpush1.msra.mxu0 0.0
    %156 = vmatprep.subr.mxu0 0.0
    %157 = vmatpush1.msra.mxu0 0.0
    %158 = vmatprep.subr.mxu0 0.0
    %159 = vmatpush1.msra.mxu0 0.0
    %160 = vmatprep.subr.mxu0 0.0
    %161 = vmatpush1.msra.mxu0 0.0
    %162 = vmatprep.subr.mxu0 0.0
    %163 = vmatpush1.msra.mxu0 0.0
    %164 = vmatprep.subr.mxu0 0.0
    %165 = vmatpush1.msra.mxu0 0.0
    %166 = vmatprep.subr.mxu0 0.0
    %167 = vmatpush1.msra.mxu0 0.0
    %168 = vmatprep.subr.mxu0 0.0
    %169 = vmatpush1.msra.mxu0 0.0
    %170 = vmatprep.subr.mxu0 0.0
    %171 = vmatpush1.msra.mxu0 0.0
    %172 = vmatprep.subr.mxu0 0.0
    %173 = vmatpush1.msra.mxu0 0.0
    %174 = vmatprep.subr.mxu0 0.0
    %175 = vmatpush1.msra.mxu0 0.0
    %176 = vmatprep.subr.mxu0 0.0
    %177 = vmatpush1.msra.mxu0 0.0
    %178 = vmatprep.subr.mxu0 0.0
    %179 = vmatpush1.msra.mxu0 0.0
    %180 = vmatprep.subr.mxu0 0.0
    %181 = vmatpush1.msra.mxu0 0.0
    %182 = vmatprep.subr.mxu0 0.0
    %183 = vmatpush1.msra.mxu0 0.0
    %184 = vmatprep.subr.mxu0 0.0
    %185 = vmatpush1.msra.mxu0 0.0
    %186 = vmatprep.subr.mxu0 0.0
    %187 = vmatpush1.msra.mxu0 0.0
    %188 = vmatprep.subr.mxu0 0.0
    %189 = vmatpush1.msra.mxu0 0.0
    %190 = vmatprep.subr.mxu0 0.0
    %191 = vmatpush1.msra.mxu0 0.0
    %192 = vmatprep.mubr.f32.mxu0 0.0
    %193 = vmatmul.mubr.f32.gmra.mrb[0].mxu0 %v126
    %v194 = vpop.f32.mrb[0].mxu0
    %v195 = vadd.f32 0.0, %v194
    %v196 = vpop.f32.mrb[0].mxu0
    %197 = vdwg.mxu0
    %v198 = vadd.f32 %v121, %v195
    %v199 = vtanh.pop %v198
    %v200 = vld [vmem:[%s0 + $0x1] sm:$0x1]
    %v201 = vld [vmem:[%s0 + $0x9] sm:$0x1]
    %v204 = vrot.slane %v201, 7
    %v205 = vsel %vm49, %v204, %v200
    %v206 = vsel %vm51, %v205, 0
    %208 = vmatprep.subr.mxu0 0.0
    %209 = vmatpush1.msra.mxu0 %v30
    %210 = vmatprep.subr.mxu0 0.0
    %211 = vmatpush1.msra.mxu0 %v31
    %212 = vmatprep.subr.mxu0 0.0
    %213 = vmatpush1.msra.mxu0 0.0
    %214 = vmatprep.subr.mxu0 0.0
    %215 = vmatpush1.msra.mxu0 0.0
    %216 = vmatprep.subr.mxu0 0.0
    %217 = vmatpush1.msra.mxu0 0.0
    %218 = vmatprep.subr.mxu0 0.0
    %219 = vmatpush1.msra.mxu0 0.0
    %220 = vmatprep.subr.mxu0 0.0
    %221 = vmatpush1.msra.mxu0 0.0
    %222 = vmatprep.subr.mxu0 0.0
    %223 = vmatpush1.msra.mxu0 0.0
    %224 = vmatprep.subr.mxu0 0.0
    %225 = vmatpush1.msra.mxu0 0.0
    %226 = vmatprep.subr.mxu0 0.0
    %227 = vmatpush1.msra.mxu0 0.0
    %228 = vmatprep.subr.mxu0 0.0
    %229 = vmatpush1.msra.mxu0 0.0
    %230 = vmatprep.subr.mxu0 0.0
    %231 = vmatpush1.msra.mxu0 0.0
    %232 = vmatprep.subr.mxu0 0.0
    %233 = vmatpush1.msra.mxu0 0.0
    %234 = vmatprep.subr.mxu0 0.0
    %235 = vmatpush1.msra.mxu0 0.0
    %236 = vmatprep.subr.mxu0 0.0
    %237 = vmatpush1.msra.mxu0 0.0
    %238 = vmatprep.subr.mxu0 0.0
    %239 = vmatpush1.msra.mxu0 0.0
    %240 = vmatprep.subr.mxu0 0.0
    %241 = vmatpush1.msra.mxu0 0.0
    %242 = vmatprep.subr.mxu0 0.0
    %243 = vmatpush1.msra.mxu0 0.0
    %244 = vmatprep.subr.mxu0 0.0
    %245 = vmatpush1.msra.mxu0 0.0
    %246 = vmatprep.subr.mxu0 0.0
    %247 = vmatpush1.msra.mxu0 0.0
    %248 = vmatprep.subr.mxu0 0.0
    %249 = vmatpush1.msra.mxu0 0.0
    %250 = vmatprep.subr.mxu0 0.0
    %251 = vmatpush1.msra.mxu0 0.0
    %252 = vmatprep.subr.mxu0 0.0
    %253 = vmatpush1.msra.mxu0 0.0
    %254 = vmatprep.subr.mxu0 0.0
    %255 = vmatpush1.msra.mxu0 0.0
    %256 = vmatprep.subr.mxu0 0.0
    %257 = vmatpush1.msra.mxu0 0.0
    %258 = vmatprep.subr.mxu0 0.0
    %259 = vmatpush1.msra.mxu0 0.0
    %260 = vmatprep.subr.mxu0 0.0
    %261 = vmatpush1.msra.mxu0 0.0
    %262 = vmatprep.subr.mxu0 0.0
    %263 = vmatpush1.msra.mxu0 0.0
    %264 = vmatprep.subr.mxu0 0.0
    %265 = vmatpush1.msra.mxu0 0.0
    %266 = vmatprep.subr.mxu0 0.0
    %267 = vmatpush1.msra.mxu0 0.0
    %268 = vmatprep.subr.mxu0 0.0
    %269 = vmatpush1.msra.mxu0 0.0
    %270 = vmatprep.subr.mxu0 0.0
    %271 = vmatpush1.msra.mxu0 0.0
    %272 = vmatprep.mubr.f32.mxu0 0.0
    %273 = vmatmul.mubr.f32.gmra.mrb[0].mxu0 %v206
    %v274 = vpop.f32.mrb[0].mxu0
    %v275 = vadd.f32 %v41, %v274
    %v276 = vpop.f32.mrb[0].mxu0
    %277 = vdwg.mxu0
    %v279 = vsel %vm124, %v199, 0
    %281 = vmatprep.subr.mxu0 0.0
    %282 = vmatpush1.msra.mxu0 %v32
    %283 = vmatprep.subr.mxu0 0.0
    %284 = vmatpush1.msra.mxu0 %v33
    %285 = vmatprep.subr.mxu0 0.0
    %286 = vmatpush1.msra.mxu0 %v34
    %287 = vmatprep.subr.mxu0 0.0
    %288 = vmatpush1.msra.mxu0 %v35
    %289 = vmatprep.subr.mxu0 0.0
    %290 = vmatpush1.msra.mxu0 0.0
    %291 = vmatprep.subr.mxu0 0.0
    %292 = vmatpush1.msra.mxu0 0.0
    %293 = vmatprep.subr.mxu0 0.0
    %294 = vmatpush1.msra.mxu0 0.0
    %295 = vmatprep.subr.mxu0 0.0
    %296 = vmatpush1.msra.mxu0 0.0
    %297 = vmatprep.subr.mxu0 0.0
    %298 = vmatpush1.msra.mxu0 0.0
    %299 = vmatprep.subr.mxu0 0.0
    %300 = vmatpush1.msra.mxu0 0.0
    %301 = vmatprep.subr.mxu0 0.0
    %302 = vmatpush1.msra.mxu0 0.0
    %303 = vmatprep.subr.mxu0 0.0
    %304 = vmatpush1.msra.mxu0 0.0
    %305 = vmatprep.subr.mxu0 0.0
    %306 = vmatpush1.msra.mxu0 0.0
    %307 = vmatprep.subr.mxu0 0.0
    %308 = vmatpush1.msra.mxu0 0.0
    %309 = vmatprep.subr.mxu0 0.0
    %310 = vmatpush1.msra.mxu0 0.0
    %311 = vmatprep.subr.mxu0 0.0
    %312 = vmatpush1.msra.mxu0 0.0
    %313 = vmatprep.subr.mxu0 0.0
    %314 = vmatpush1.msra.mxu0 0.0
    %315 = vmatprep.subr.mxu0 0.0
    %316 = vmatpush1.msra.mxu0 0.0
    %317 = vmatprep.subr.mxu0 0.0
    %318 = vmatpush1.msra.mxu0 0.0
    %319 = vmatprep.subr.mxu0 0.0
    %320 = vmatpush1.msra.mxu0 0.0
    %321 = vmatprep.subr.mxu0 0.0
    %322 = vmatpush1.msra.mxu0 0.0
    %323 = vmatprep.subr.mxu0 0.0
    %324 = vmatpush1.msra.mxu0 0.0
    %325 = vmatprep.subr.mxu0 0.0
    %326 = vmatpush1.msra.mxu0 0.0
    %327 = vmatprep.subr.mxu0 0.0
    %328 = vmatpush1.msra.mxu0 0.0
    %329 = vmatprep.subr.mxu0 0.0
    %330 = vmatpush1.msra.mxu0 0.0
    %331 = vmatprep.subr.mxu0 0.0
    %332 = vmatpush1.msra.mxu0 0.0
    %333 = vmatprep.subr.mxu0 0.0
    %334 = vmatpush1.msra.mxu0 0.0
    %335 = vmatprep.subr.mxu0 0.0
    %336 = vmatpush1.msra.mxu0 0.0
    %337 = vmatprep.subr.mxu0 0.0
    %338 = vmatpush1.msra.mxu0 0.0
    %339 = vmatprep.subr.mxu0 0.0
    %340 = vmatpush1.msra.mxu0 0.0
    %341 = vmatprep.subr.mxu0 0.0
    %342 = vmatpush1.msra.mxu0 0.0
    %343 = vmatprep.subr.mxu0 0.0
    %344 = vmatpush1.msra.mxu0 0.0
    %345 = vmatprep.mubr.f32.mxu0 0.0
    %346 = vmatmul.mubr.f32.gmra.mrb[0].mxu0 %v279
    %v347 = vpop.f32.mrb[0].mxu0
    %v348 = vadd.f32 0.0, %v347
    %v349 = vpop.f32.mrb[0].mxu0
    %350 = vdwg.mxu0
    %v351 = vadd.f32 %v275, %v348
    %v352 = vtanh.pop %v351
    %v353 = vld [vmem:[%s0 + $0x2] sm:$0x1]
    %v354 = vld [vmem:[%s0 + $0xa] sm:$0x1]
    %v357 = vrot.slane %v354, 7
    %v358 = vsel %vm49, %v357, %v353
    %v359 = vsel %vm51, %v358, 0
    %361 = vmatprep.subr.mxu0 0.0
    %362 = vmatpush1.msra.mxu0 %v30
    %363 = vmatprep.subr.mxu0 0.0
    %364 = vmatpush1.msra.mxu0 %v31
    %365 = vmatprep.subr.mxu0 0.0
    %366 = vmatpush1.msra.mxu0 0.0
    %367 = vmatprep.subr.mxu0 0.0
    %368 = vmatpush1.msra.mxu0 0.0
    %369 = vmatprep.subr.mxu0 0.0
    %370 = vmatpush1.msra.mxu0 0.0
    %371 = vmatprep.subr.mxu0 0.0
    %372 = vmatpush1.msra.mxu0 0.0
    %373 = vmatprep.subr.mxu0 0.0
    %374 = vmatpush1.msra.mxu0 0.0
    %375 = vmatprep.subr.mxu0 0.0
    %376 = vmatpush1.msra.mxu0 0.0
    %377 = vmatprep.subr.mxu0 0.0
    %378 = vmatpush1.msra.mxu0 0.0
    %379 = vmatprep.subr.mxu0 0.0
    %380 = vmatpush1.msra.mxu0 0.0
    %381 = vmatprep.subr.mxu0 0.0
    %382 = vmatpush1.msra.mxu0 0.0
    %383 = vmatprep.subr.mxu0 0.0
    %384 = vmatpush1.msra.mxu0 0.0
    %385 = vmatprep.subr.mxu0 0.0
    %386 = vmatpush1.msra.mxu0 0.0
    %387 = vmatprep.subr.mxu0 0.0
    %388 = vmatpush1.msra.mxu0 0.0
    %389 = vmatprep.subr.mxu0 0.0
    %390 = vmatpush1.msra.mxu0 0.0
    %391 = vmatprep.subr.mxu0 0.0
    %392 = vmatpush1.msra.mxu0 0.0
    %393 = vmatprep.subr.mxu0 0.0
    %394 = vmatpush1.msra.mxu0 0.0
    %395 = vmatprep.subr.mxu0 0.0
    %396 = vmatpush1.msra.mxu0 0.0
    %397 = vmatprep.subr.mxu0 0.0
    %398 = vmatpush1.msra.mxu0 0.0
    %399 = vmatprep.subr.mxu0 0.0
    %400 = vmatpush1.msra.mxu0 0.0
    %401 = vmatprep.subr.mxu0 0.0
    %402 = vmatpush1.msra.mxu0 0.0
    %403 = vmatprep.subr.mxu0 0.0
    %404 = vmatpush1.msra.mxu0 0.0
    %405 = vmatprep.subr.mxu0 0.0
    %406 = vmatpush1.msra.mxu0 0.0
    %407 = vmatprep.subr.mxu0 0.0
    %408 = vmatpush1.msra.mxu0 0.0
    %409 = vmatprep.subr.mxu0 0.0
    %410 = vmatpush1.msra.mxu0 0.0
    %411 = vmatprep.subr.mxu0 0.0
    %412 = vmatpush1.msra.mxu0 0.0
    %413 = vmatprep.subr.mxu0 0.0
    %414 = vmatpush1.msra.mxu0 0.0
    %415 = vmatprep.subr.mxu0 0.0
    %416 = vmatpush1.msra.mxu0 0.0
    %417 = vmatprep.subr.mxu0 0.0
    %418 = vmatpush1.msra.mxu0 0.0
    %419 = vmatprep.subr.mxu0 0.0
    %420 = vmatpush1.msra.mxu0 0.0
    %421 = vmatprep.subr.mxu0 0.0
    %422 = vmatpush1.msra.mxu0 0.0
    %423 = vmatprep.subr.mxu0 0.0
    %424 = vmatpush1.msra.mxu0 0.0
    %425 = vmatprep.mubr.f32.mxu0 0.0
    %426 = vmatmul.mubr.f32.gmra.mrb[0].mxu0 %v359
    %v427 = vpop.f32.mrb[0].mxu0
    %v428 = vadd.f32 %v41, %v427
    %v429 = vpop.f32.mrb[0].mxu0
    %430 = vdwg.mxu0
    %v432 = vsel %vm124, %v352, 0
    %434 = vmatprep.subr.mxu0 0.0
    %435 = vmatpush1.msra.mxu0 %v32
    %436 = vmatprep.subr.mxu0 0.0
    %437 = vmatpush1.msra.mxu0 %v33
    %438 = vmatprep.subr.mxu0 0.0
    %439 = vmatpush1.msra.mxu0 %v34
    %440 = vmatprep.subr.mxu0 0.0
    %441 = vmatpush1.msra.mxu0 %v35
    %442 = vmatprep.subr.mxu0 0.0
    %443 = vmatpush1.msra.mxu0 0.0
    %444 = vmatprep.subr.mxu0 0.0
    %445 = vmatpush1.msra.mxu0 0.0
    %446 = vmatprep.subr.mxu0 0.0
    %447 = vmatpush1.msra.mxu0 0.0
    %448 = vmatprep.subr.mxu0 0.0
    %449 = vmatpush1.msra.mxu0 0.0
    %450 = vmatprep.subr.mxu0 0.0
    %451 = vmatpush1.msra.mxu0 0.0
    %452 = vmatprep.subr.mxu0 0.0
    %453 = vmatpush1.msra.mxu0 0.0
    %454 = vmatprep.subr.mxu0 0.0
    %455 = vmatpush1.msra.mxu0 0.0
    %456 = vmatprep.subr.mxu0 0.0
    %457 = vmatpush1.msra.mxu0 0.0
    %458 = vmatprep.subr.mxu0 0.0
    %459 = vmatpush1.msra.mxu0 0.0
    %460 = vmatprep.subr.mxu0 0.0
    %461 = vmatpush1.msra.mxu0 0.0
    %462 = vmatprep.subr.mxu0 0.0
    %463 = vmatpush1.msra.mxu0 0.0
    %464 = vmatprep.subr.mxu0 0.0
    %465 = vmatpush1.msra.mxu0 0.0
    %466 = vmatprep.subr.mxu0 0.0
    %467 = vmatpush1.msra.mxu0 0.0
    %468 = vmatprep.subr.mxu0 0.0
    %469 = vmatpush1.msra.mxu0 0.0
    %470 = vmatprep.subr.mxu0 0.0
    %471 = vmatpush1.msra.mxu0 0.0
    %472 = vmatprep.subr.mxu0 0.0
    %473 = vmatpush1.msra.mxu0 0.0
    %474 = vmatprep.subr.mxu0 0.0
    %475 = vmatpush1.msra.mxu0 0.0
    %476 = vmatprep.subr.mxu0 0.0
    %477 = vmatpush1.msra.mxu0 0.0
    %478 = vmatprep.subr.mxu0 0.0
    %479 = vmatpush1.msra.mxu0 0.0
    %480 = vmatprep.subr.mxu0 0.0
    %481 = vmatpush1.msra.mxu0 0.0
    %482 = vmatprep.subr.mxu0 0.0
    %483 = vmatpush1.msra.mxu0 0.0
    %484 = vmatprep.subr.mxu0 0.0
    %485 = vmatpush1.msra.mxu0 0.0
    %486 = vmatprep.subr.mxu0 0.0
    %487 = vmatpush1.msra.mxu0 0.0
    %488 = vmatprep.subr.mxu0 0.0
    %489 = vmatpush1.msra.mxu0 0.0
    %490 = vmatprep.subr.mxu0 0.0
    %491 = vmatpush1.msra.mxu0 0.0
    %492 = vmatprep.subr.mxu0 0.0
    %493 = vmatpush1.msra.mxu0 0.0
    %494 = vmatprep.subr.mxu0 0.0
    %495 = vmatpush1.msra.mxu0 0.0
    %496 = vmatprep.subr.mxu0 0.0
    %497 = vmatpush1.msra.mxu0 0.0
    %498 = vmatprep.mubr.f32.mxu0 0.0
    %499 = vmatmul.mubr.f32.gmra.mrb[0].mxu0 %v432
    %v500 = vpop.f32.mrb[0].mxu0
    %v501 = vadd.f32 0.0, %v500
    %v502 = vpop.f32.mrb[0].mxu0
    %503 = vdwg.mxu0
    %v504 = vadd.f32 %v428, %v501
    %v505 = vtanh.pop %v504
    %v506 = vld [vmem:[%s0 + $0x3] sm:$0x1]
    %v507 = vld [vmem:[%s0 + $0xb] sm:$0x1]
    %v510 = vrot.slane %v507, 7
    %v511 = vsel %vm49, %v510, %v506
    %v512 = vsel %vm51, %v511, 0
    %514 = vmatprep.subr.mxu0 0.0
    %515 = vmatpush1.msra.mxu0 %v30
    %516 = vmatprep.subr.mxu0 0.0
    %517 = vmatpush1.msra.mxu0 %v31
    %518 = vmatprep.subr.mxu0 0.0
    %519 = vmatpush1.msra.mxu0 0.0
    %520 = vmatprep.subr.mxu0 0.0
    %521 = vmatpush1.msra.mxu0 0.0
    %522 = vmatprep.subr.mxu0 0.0
    %523 = vmatpush1.msra.mxu0 0.0
    %524 = vmatprep.subr.mxu0 0.0
    %525 = vmatpush1.msra.mxu0 0.0
    %526 = vmatprep.subr.mxu0 0.0
    %527 = vmatpush1.msra.mxu0 0.0
    %528 = vmatprep.subr.mxu0 0.0
    %529 = vmatpush1.msra.mxu0 0.0
    %530 = vmatprep.subr.mxu0 0.0
    %531 = vmatpush1.msra.mxu0 0.0
    %532 = vmatprep.subr.mxu0 0.0
    %533 = vmatpush1.msra.mxu0 0.0
    %534 = vmatprep.subr.mxu0 0.0
    %535 = vmatpush1.msra.mxu0 0.0
    %536 = vmatprep.subr.mxu0 0.0
    %537 = vmatpush1.msra.mxu0 0.0
    %538 = vmatprep.subr.mxu0 0.0
    %539 = vmatpush1.msra.mxu0 0.0
    %540 = vmatprep.subr.mxu0 0.0
    %541 = vmatpush1.msra.mxu0 0.0
    %542 = vmatprep.subr.mxu0 0.0
    %543 = vmatpush1.msra.mxu0 0.0
    %544 = vmatprep.subr.mxu0 0.0
    %545 = vmatpush1.msra.mxu0 0.0
    %546 = vmatprep.subr.mxu0 0.0
    %547 = vmatpush1.msra.mxu0 0.0
    %548 = vmatprep.subr.mxu0 0.0
    %549 = vmatpush1.msra.mxu0 0.0
    %550 = vmatprep.subr.mxu0 0.0
    %551 = vmatpush1.msra.mxu0 0.0
    %552 = vmatprep.subr.mxu0 0.0
    %553 = vmatpush1.msra.mxu0 0.0
    %554 = vmatprep.subr.mxu0 0.0
    %555 = vmatpush1.msra.mxu0 0.0
    %556 = vmatprep.subr.mxu0 0.0
    %557 = vmatpush1.msra.mxu0 0.0
    %558 = vmatprep.subr.mxu0 0.0
    %559 = vmatpush1.msra.mxu0 0.0
    %560 = vmatprep.subr.mxu0 0.0
    %561 = vmatpush1.msra.mxu0 0.0
    %562 = vmatprep.subr.mxu0 0.0
    %563 = vmatpush1.msra.mxu0 0.0
    %564 = vmatprep.subr.mxu0 0.0
    %565 = vmatpush1.msra.mxu0 0.0
    %566 = vmatprep.subr.mxu0 0.0
    %567 = vmatpush1.msra.mxu0 0.0
    %568 = vmatprep.subr.mxu0 0.0
    %569 = vmatpush1.msra.mxu0 0.0
    %570 = vmatprep.subr.mxu0 0.0
    %571 = vmatpush1.msra.mxu0 0.0
    %572 = vmatprep.subr.mxu0 0.0
    %573 = vmatpush1.msra.mxu0 0.0
    %574 = vmatprep.subr.mxu0 0.0
    %575 = vmatpush1.msra.mxu0 0.0
    %576 = vmatprep.subr.mxu0 0.0
    %577 = vmatpush1.msra.mxu0 0.0
    %578 = vmatprep.mubr.f32.mxu0 0.0
    %579 = vmatmul.mubr.f32.gmra.mrb[0].mxu0 %v512
    %v580 = vpop.f32.mrb[0].mxu0
    %v581 = vadd.f32 %v41, %v580
    %v582 = vpop.f32.mrb[0].mxu0
    %583 = vdwg.mxu0
    %v585 = vsel %vm124, %v505, 0
    %587 = vmatprep.subr.mxu0 0.0
    %588 = vmatpush1.msra.mxu0 %v32
    %589 = vmatprep.subr.mxu0 0.0
    %590 = vmatpush1.msra.mxu0 %v33
    %591 = vmatprep.subr.mxu0 0.0
    %592 = vmatpush1.msra.mxu0 %v34
    %593 = vmatprep.subr.mxu0 0.0
    %594 = vmatpush1.msra.mxu0 %v35
    %595 = vmatprep.subr.mxu0 0.0
    %596 = vmatpush1.msra.mxu0 0.0
    %597 = vmatprep.subr.mxu0 0.0
    %598 = vmatpush1.msra.mxu0 0.0
    %599 = vmatprep.subr.mxu0 0.0
    %600 = vmatpush1.msra.mxu0 0.0
    %601 = vmatprep.subr.mxu0 0.0
    %602 = vmatpush1.msra.mxu0 0.0
    %603 = vmatprep.subr.mxu0 0.0
    %604 = vmatpush1.msra.mxu0 0.0
    %605 = vmatprep.subr.mxu0 0.0
    %606 = vmatpush1.msra.mxu0 0.0
    %607 = vmatprep.subr.mxu0 0.0
    %608 = vmatpush1.msra.mxu0 0.0
    %609 = vmatprep.subr.mxu0 0.0
    %610 = vmatpush1.msra.mxu0 0.0
    %611 = vmatprep.subr.mxu0 0.0
    %612 = vmatpush1.msra.mxu0 0.0
    %613 = vmatprep.subr.mxu0 0.0
    %614 = vmatpush1.msra.mxu0 0.0
    %615 = vmatprep.subr.mxu0 0.0
    %616 = vmatpush1.msra.mxu0 0.0
    %617 = vmatprep.subr.mxu0 0.0
    %618 = vmatpush1.msra.mxu0 0.0
    %619 = vmatprep.subr.mxu0 0.0
    %620 = vmatpush1.msra.mxu0 0.0
    %621 = vmatprep.subr.mxu0 0.0
    %622 = vmatpush1.msra.mxu0 0.0
    %623 = vmatprep.subr.mxu0 0.0
    %624 = vmatpush1.msra.mxu0 0.0
    %625 = vmatprep.subr.mxu0 0.0
    %626 = vmatpush1.msra.mxu0 0.0
    %627 = vmatprep.subr.mxu0 0.0
    %628 = vmatpush1.msra.mxu0 0.0
    %629 = vmatprep.subr.mxu0 0.0
    %630 = vmatpush1.msra.mxu0 0.0
    %631 = vmatprep.subr.mxu0 0.0
    %632 = vmatpush1.msra.mxu0 0.0
    %633 = vmatprep.subr.mxu0 0.0
    %634 = vmatpush1.msra.mxu0 0.0
    %635 = vmatprep.subr.mxu0 0.0
    %636 = vmatpush1.msra.mxu0 0.0
    %637 = vmatprep.subr.mxu0 0.0
    %638 = vmatpush1.msra.mxu0 0.0
    %639 = vmatprep.subr.mxu0 0.0
    %640 = vmatpush1.msra.mxu0 0.0
    %641 = vmatprep.subr.mxu0 0.0
    %642 = vmatpush1.msra.mxu0 0.0
    %643 = vmatprep.subr.mxu0 0.0
    %644 = vmatpush1.msra.mxu0 0.0
    %645 = vmatprep.subr.mxu0 0.0
    %646 = vmatpush1.msra.mxu0 0.0
    %647 = vmatprep.subr.mxu0 0.0
    %648 = vmatpush1.msra.mxu0 0.0
    %649 = vmatprep.subr.mxu0 0.0
    %650 = vmatpush1.msra.mxu0 0.0
    %651 = vmatprep.mubr.f32.mxu0 0.0
    %652 = vmatmul.mubr.f32.gmra.mrb[0].mxu0 %v585
    %v653 = vpop.f32.mrb[0].mxu0
    %v654 = vadd.f32 0.0, %v653
    %v655 = vpop.f32.mrb[0].mxu0
    %656 = vdwg.mxu0
    %v657 = vadd.f32 %v581, %v654
    %v658 = vtanh.pop %v657
    %v659 = vld [vmem:[%s0 + $0x4] sm:$0x1]
    %v660 = vld [vmem:[%s0 + $0xc] sm:$0x1]
    %v663 = vrot.slane %v660, 7
    %v664 = vsel %vm49, %v663, %v659
    %v665 = vsel %vm51, %v664, 0
    %667 = vmatprep.subr.mxu0 0.0
    %668 = vmatpush1.msra.mxu0 %v30
    %669 = vmatprep.subr.mxu0 0.0
    %670 = vmatpush1.msra.mxu0 %v31
    %671 = vmatprep.subr.mxu0 0.0
    %672 = vmatpush1.msra.mxu0 0.0
    %673 = vmatprep.subr.mxu0 0.0
    %674 = vmatpush1.msra.mxu0 0.0
    %675 = vmatprep.subr.mxu0 0.0
    %676 = vmatpush1.msra.mxu0 0.0
    %677 = vmatprep.subr.mxu0 0.0
    %678 = vmatpush1.msra.mxu0 0.0
    %679 = vmatprep.subr.mxu0 0.0
    %680 = vmatpush1.msra.mxu0 0.0
    %681 = vmatprep.subr.mxu0 0.0
    %682 = vmatpush1.msra.mxu0 0.0
    %683 = vmatprep.subr.mxu0 0.0
    %684 = vmatpush1.msra.mxu0 0.0
    %685 = vmatprep.subr.mxu0 0.0
    %686 = vmatpush1.msra.mxu0 0.0
    %687 = vmatprep.subr.mxu0 0.0
    %688 = vmatpush1.msra.mxu0 0.0
    %689 = vmatprep.subr.mxu0 0.0
    %690 = vmatpush1.msra.mxu0 0.0
    %691 = vmatprep.subr.mxu0 0.0
    %692 = vmatpush1.msra.mxu0 0.0
    %693 = vmatprep.subr.mxu0 0.0
    %694 = vmatpush1.msra.mxu0 0.0
    %695 = vmatprep.subr.mxu0 0.0
    %696 = vmatpush1.msra.mxu0 0.0
    %697 = vmatprep.subr.mxu0 0.0
    %698 = vmatpush1.msra.mxu0 0.0
    %699 = vmatprep.subr.mxu0 0.0
    %700 = vmatpush1.msra.mxu0 0.0
    %701 = vmatprep.subr.mxu0 0.0
    %702 = vmatpush1.msra.mxu0 0.0
    %703 = vmatprep.subr.mxu0 0.0
    %704 = vmatpush1.msra.mxu0 0.0
    %705 = vmatprep.subr.mxu0 0.0
    %706 = vmatpush1.msra.mxu0 0.0
    %707 = vmatprep.subr.mxu0 0.0
    %708 = vmatpush1.msra.mxu0 0.0
    %709 = vmatprep.subr.mxu0 0.0
    %710 = vmatpush1.msra.mxu0 0.0
    %711 = vmatprep.subr.mxu0 0.0
    %712 = vmatpush1.msra.mxu0 0.0
    %713 = vmatprep.subr.mxu0 0.0
    %714 = vmatpush1.msra.mxu0 0.0
    %715 = vmatprep.subr.mxu0 0.0
    %716 = vmatpush1.msra.mxu0 0.0
    %717 = vmatprep.subr.mxu0 0.0
    %718 = vmatpush1.msra.mxu0 0.0
    %719 = vmatprep.subr.mxu0 0.0
    %720 = vmatpush1.msra.mxu0 0.0
    %721 = vmatprep.subr.mxu0 0.0
    %722 = vmatpush1.msra.mxu0 0.0
    %723 = vmatprep.subr.mxu0 0.0
    %724 = vmatpush1.msra.mxu0 0.0
    %725 = vmatprep.subr.mxu0 0.0
    %726 = vmatpush1.msra.mxu0 0.0
    %727 = vmatprep.subr.mxu0 0.0
    %728 = vmatpush1.msra.mxu0 0.0
    %729 = vmatprep.subr.mxu0 0.0
    %730 = vmatpush1.msra.mxu0 0.0
    %731 = vmatprep.mubr.f32.mxu0 0.0
    %732 = vmatmul.mubr.f32.gmra.mrb[0].mxu0 %v665
    %v733 = vpop.f32.mrb[0].mxu0
    %v734 = vadd.f32 %v41, %v733
    %v735 = vpop.f32.mrb[0].mxu0
    %736 = vdwg.mxu0
    %v738 = vsel %vm124, %v658, 0
    %740 = vmatprep.subr.mxu0 0.0
    %741 = vmatpush1.msra.mxu0 %v32
    %742 = vmatprep.subr.mxu0 0.0
    %743 = vmatpush1.msra.mxu0 %v33
    %744 = vmatprep.subr.mxu0 0.0
    %745 = vmatpush1.msra.mxu0 %v34
    %746 = vmatprep.subr.mxu0 0.0
    %747 = vmatpush1.msra.mxu0 %v35
    %748 = vmatprep.subr.mxu0 0.0
    %749 = vmatpush1.msra.mxu0 0.0
    %750 = vmatprep.subr.mxu0 0.0
    %751 = vmatpush1.msra.mxu0 0.0
    %752 = vmatprep.subr.mxu0 0.0
    %753 = vmatpush1.msra.mxu0 0.0
    %754 = vmatprep.subr.mxu0 0.0
    %755 = vmatpush1.msra.mxu0 0.0
    %756 = vmatprep.subr.mxu0 0.0
    %757 = vmatpush1.msra.mxu0 0.0
    %758 = vmatprep.subr.mxu0 0.0
    %759 = vmatpush1.msra.mxu0 0.0
    %760 = vmatprep.subr.mxu0 0.0
    %761 = vmatpush1.msra.mxu0 0.0
    %762 = vmatprep.subr.mxu0 0.0
    %763 = vmatpush1.msra.mxu0 0.0
    %764 = vmatprep.subr.mxu0 0.0
    %765 = vmatpush1.msra.mxu0 0.0
    %766 = vmatprep.subr.mxu0 0.0
    %767 = vmatpush1.msra.mxu0 0.0
    %768 = vmatprep.subr.mxu0 0.0
    %769 = vmatpush1.msra.mxu0 0.0
    %770 = vmatprep.subr.mxu0 0.0
    %771 = vmatpush1.msra.mxu0 0.0
    %772 = vmatprep.subr.mxu0 0.0
    %773 = vmatpush1.msra.mxu0 0.0
    %774 = vmatprep.subr.mxu0 0.0
    %775 = vmatpush1.msra.mxu0 0.0
    %776 = vmatprep.subr.mxu0 0.0
    %777 = vmatpush1.msra.mxu0 0.0
    %778 = vmatprep.subr.mxu0 0.0
    %779 = vmatpush1.msra.mxu0 0.0
    %780 = vmatprep.subr.mxu0 0.0
    %781 = vmatpush1.msra.mxu0 0.0
    %782 = vmatprep.subr.mxu0 0.0
    %783 = vmatpush1.msra.mxu0 0.0
    %784 = vmatprep.subr.mxu0 0.0
    %785 = vmatpush1.msra.mxu0 0.0
    %786 = vmatprep.subr.mxu0 0.0
    %787 = vmatpush1.msra.mxu0 0.0
    %788 = vmatprep.subr.mxu0 0.0
    %789 = vmatpush1.msra.mxu0 0.0
    %790 = vmatprep.subr.mxu0 0.0
    %791 = vmatpush1.msra.mxu0 0.0
    %792 = vmatprep.subr.mxu0 0.0
    %793 = vmatpush1.msra.mxu0 0.0
    %794 = vmatprep.subr.mxu0 0.0
    %795 = vmatpush1.msra.mxu0 0.0
    %796 = vmatprep.subr.mxu0 0.0
    %797 = vmatpush1.msra.mxu0 0.0
    %798 = vmatprep.subr.mxu0 0.0
    %799 = vmatpush1.msra.mxu0 0.0
    %800 = vmatprep.subr.mxu0 0.0
    %801 = vmatpush1.msra.mxu0 0.0
    %802 = vmatprep.subr.mxu0 0.0
    %803 = vmatpush1.msra.mxu0 0.0
    %804 = vmatprep.mubr.f32.mxu0 0.0
    %805 = vmatmul.mubr.f32.gmra.mrb[0].mxu0 %v738
    %v806 = vpop.f32.mrb[0].mxu0
    %v807 = vadd.f32 0.0, %v806
    %v808 = vpop.f32.mrb[0].mxu0
    %809 = vdwg.mxu0
    %v810 = vadd.f32 %v734, %v807
    %v811 = vtanh.pop %v810
    %v812 = vld [vmem:[%s0 + $0x5] sm:$0x1]
    %v813 = vld [vmem:[%s0 + $0xd] sm:$0x1]
    %v816 = vrot.slane %v813, 7
    %v817 = vsel %vm49, %v816, %v812
    %v818 = vsel %vm51, %v817, 0
    %820 = vmatprep.subr.mxu0 0.0
    %821 = vmatpush1.msra.mxu0 %v30
    %822 = vmatprep.subr.mxu0 0.0
    %823 = vmatpush1.msra.mxu0 %v31
    %824 = vmatprep.subr.mxu0 0.0
    %825 = vmatpush1.msra.mxu0 0.0
    %826 = vmatprep.subr.mxu0 0.0
    %827 = vmatpush1.msra.mxu0 0.0
    %828 = vmatprep.subr.mxu0 0.0
    %829 = vmatpush1.msra.mxu0 0.0
    %830 = vmatprep.subr.mxu0 0.0
    %831 = vmatpush1.msra.mxu0 0.0
    %832 = vmatprep.subr.mxu0 0.0
    %833 = vmatpush1.msra.mxu0 0.0
    %834 = vmatprep.subr.mxu0 0.0
    %835 = vmatpush1.msra.mxu0 0.0
    %836 = vmatprep.subr.mxu0 0.0
    %837 = vmatpush1.msra.mxu0 0.0
    %838 = vmatprep.subr.mxu0 0.0
    %839 = vmatpush1.msra.mxu0 0.0
    %840 = vmatprep.subr.mxu0 0.0
    %841 = vmatpush1.msra.mxu0 0.0
    %842 = vmatprep.subr.mxu0 0.0
    %843 = vmatpush1.msra.mxu0 0.0
    %844 = vmatprep.subr.mxu0 0.0
    %845 = vmatpush1.msra.mxu0 0.0
    %846 = vmatprep.subr.mxu0 0.0
    %847 = vmatpush1.msra.mxu0 0.0
    %848 = vmatprep.subr.mxu0 0.0
    %849 = vmatpush1.msra.mxu0 0.0
    %850 = vmatprep.subr.mxu0 0.0
    %851 = vmatpush1.msra.mxu0 0.0
    %852 = vmatprep.subr.mxu0 0.0
    %853 = vmatpush1.msra.mxu0 0.0
    %854 = vmatprep.subr.mxu0 0.0
    %855 = vmatpush1.msra.mxu0 0.0
    %856 = vmatprep.subr.mxu0 0.0
    %857 = vmatpush1.msra.mxu0 0.0
    %858 = vmatprep.subr.mxu0 0.0
    %859 = vmatpush1.msra.mxu0 0.0
    %860 = vmatprep.subr.mxu0 0.0
    %861 = vmatpush1.msra.mxu0 0.0
    %862 = vmatprep.subr.mxu0 0.0
    %863 = vmatpush1.msra.mxu0 0.0
    %864 = vmatprep.subr.mxu0 0.0
    %865 = vmatpush1.msra.mxu0 0.0
    %866 = vmatprep.subr.mxu0 0.0
    %867 = vmatpush1.msra.mxu0 0.0
    %868 = vmatprep.subr.mxu0 0.0
    %869 = vmatpush1.msra.mxu0 0.0
    %870 = vmatprep.subr.mxu0 0.0
    %871 = vmatpush1.msra.mxu0 0.0
    %872 = vmatprep.subr.mxu0 0.0
    %873 = vmatpush1.msra.mxu0 0.0
    %874 = vmatprep.subr.mxu0 0.0
    %875 = vmatpush1.msra.mxu0 0.0
    %876 = vmatprep.subr.mxu0 0.0
    %877 = vmatpush1.msra.mxu0 0.0
    %878 = vmatprep.subr.mxu0 0.0
    %879 = vmatpush1.msra.mxu0 0.0
    %880 = vmatprep.subr.mxu0 0.0
    %881 = vmatpush1.msra.mxu0 0.0
    %882 = vmatprep.subr.mxu0 0.0
    %883 = vmatpush1.msra.mxu0 0.0
    %884 = vmatprep.mubr.f32.mxu0 0.0
    %885 = vmatmul.mubr.f32.gmra.mrb[0].mxu0 %v818
    %v886 = vpop.f32.mrb[0].mxu0
    %v887 = vadd.f32 %v41, %v886
    %v888 = vpop.f32.mrb[0].mxu0
    %889 = vdwg.mxu0
    %v891 = vsel %vm124, %v811, 0
    %893 = vmatprep.subr.mxu0 0.0
    %894 = vmatpush1.msra.mxu0 %v32
    %895 = vmatprep.subr.mxu0 0.0
    %896 = vmatpush1.msra.mxu0 %v33
    %897 = vmatprep.subr.mxu0 0.0
    %898 = vmatpush1.msra.mxu0 %v34
    %899 = vmatprep.subr.mxu0 0.0
    %900 = vmatpush1.msra.mxu0 %v35
    %901 = vmatprep.subr.mxu0 0.0
    %902 = vmatpush1.msra.mxu0 0.0
    %903 = vmatprep.subr.mxu0 0.0
    %904 = vmatpush1.msra.mxu0 0.0
    %905 = vmatprep.subr.mxu0 0.0
    %906 = vmatpush1.msra.mxu0 0.0
    %907 = vmatprep.subr.mxu0 0.0
    %908 = vmatpush1.msra.mxu0 0.0
    %909 = vmatprep.subr.mxu0 0.0
    %910 = vmatpush1.msra.mxu0 0.0
    %911 = vmatprep.subr.mxu0 0.0
    %912 = vmatpush1.msra.mxu0 0.0
    %913 = vmatprep.subr.mxu0 0.0
    %914 = vmatpush1.msra.mxu0 0.0
    %915 = vmatprep.subr.mxu0 0.0
    %916 = vmatpush1.msra.mxu0 0.0
    %917 = vmatprep.subr.mxu0 0.0
    %918 = vmatpush1.msra.mxu0 0.0
    %919 = vmatprep.subr.mxu0 0.0
    %920 = vmatpush1.msra.mxu0 0.0
    %921 = vmatprep.subr.mxu0 0.0
    %922 = vmatpush1.msra.mxu0 0.0
    %923 = vmatprep.subr.mxu0 0.0
    %924 = vmatpush1.msra.mxu0 0.0
    %925 = vmatprep.subr.mxu0 0.0
    %926 = vmatpush1.msra.mxu0 0.0
    %927 = vmatprep.subr.mxu0 0.0
    %928 = vmatpush1.msra.mxu0 0.0
    %929 = vmatprep.subr.mxu0 0.0
    %930 = vmatpush1.msra.mxu0 0.0
    %931 = vmatprep.subr.mxu0 0.0
    %932 = vmatpush1.msra.mxu0 0.0
    %933 = vmatprep.subr.mxu0 0.0
    %934 = vmatpush1.msra.mxu0 0.0
    %935 = vmatprep.subr.mxu0 0.0
    %936 = vmatpush1.msra.mxu0 0.0
    %937 = vmatprep.subr.mxu0 0.0
    %938 = vmatpush1.msra.mxu0 0.0
    %939 = vmatprep.subr.mxu0 0.0
    %940 = vmatpush1.msra.mxu0 0.0
    %941 = vmatprep.subr.mxu0 0.0
    %942 = vmatpush1.msra.mxu0 0.0
    %943 = vmatprep.subr.mxu0 0.0
    %944 = vmatpush1.msra.mxu0 0.0
    %945 = vmatprep.subr.mxu0 0.0
    %946 = vmatpush1.msra.mxu0 0.0
    %947 = vmatprep.subr.mxu0 0.0
    %948 = vmatpush1.msra.mxu0 0.0
    %949 = vmatprep.subr.mxu0 0.0
    %950 = vmatpush1.msra.mxu0 0.0
    %951 = vmatprep.subr.mxu0 0.0
    %952 = vmatpush1.msra.mxu0 0.0
    %953 = vmatprep.subr.mxu0 0.0
    %954 = vmatpush1.msra.mxu0 0.0
    %955 = vmatprep.subr.mxu0 0.0
    %956 = vmatpush1.msra.mxu0 0.0
    %957 = vmatprep.mubr.f32.mxu0 0.0
    %958 = vmatmul.mubr.f32.gmra.mrb[0].mxu0 %v891
    %v959 = vpop.f32.mrb[0].mxu0
    %v960 = vadd.f32 0.0, %v959
    %v961 = vpop.f32.mrb[0].mxu0
    %962 = vdwg.mxu0
    %v963 = vadd.f32 %v887, %v960
    %v964 = vtanh.pop %v963
    %v965 = vld [vmem:[%s0 + $0x6] sm:$0x1]
    %v966 = vld [vmem:[%s0 + $0xe] sm:$0x1]
    %v969 = vrot.slane %v966, 7
    %v970 = vsel %vm49, %v969, %v965
    %v971 = vsel %vm51, %v970, 0
    %973 = vmatprep.subr.mxu0 0.0
    %974 = vmatpush1.msra.mxu0 %v30
    %975 = vmatprep.subr.mxu0 0.0
    %976 = vmatpush1.msra.mxu0 %v31
    %977 = vmatprep.subr.mxu0 0.0
    %978 = vmatpush1.msra.mxu0 0.0
    %979 = vmatprep.subr.mxu0 0.0
    %980 = vmatpush1.msra.mxu0 0.0
    %981 = vmatprep.subr.mxu0 0.0
    %982 = vmatpush1.msra.mxu0 0.0
    %983 = vmatprep.subr.mxu0 0.0
    %984 = vmatpush1.msra.mxu0 0.0
    %985 = vmatprep.subr.mxu0 0.0
    %986 = vmatpush1.msra.mxu0 0.0
    %987 = vmatprep.subr.mxu0 0.0
    %988 = vmatpush1.msra.mxu0 0.0
    %989 = vmatprep.subr.mxu0 0.0
    %990 = vmatpush1.msra.mxu0 0.0
    %991 = vmatprep.subr.mxu0 0.0
    %992 = vmatpush1.msra.mxu0 0.0
    %993 = vmatprep.subr.mxu0 0.0
    %994 = vmatpush1.msra.mxu0 0.0
    %995 = vmatprep.subr.mxu0 0.0
    %996 = vmatpush1.msra.mxu0 0.0
    %997 = vmatprep.subr.mxu0 0.0
    %998 = vmatpush1.msra.mxu0 0.0
    %999 = vmatprep.subr.mxu0 0.0
    %1000 = vmatpush1.msra.mxu0 0.0
    %1001 = vmatprep.subr.mxu0 0.0
    %1002 = vmatpush1.msra.mxu0 0.0
    %1003 = vmatprep.subr.mxu0 0.0
    %1004 = vmatpush1.msra.mxu0 0.0
    %1005 = vmatprep.subr.mxu0 0.0
    %1006 = vmatpush1.msra.mxu0 0.0
    %1007 = vmatprep.subr.mxu0 0.0
    %1008 = vmatpush1.msra.mxu0 0.0
    %1009 = vmatprep.subr.mxu0 0.0
    %1010 = vmatpush1.msra.mxu0 0.0
    %1011 = vmatprep.subr.mxu0 0.0
    %1012 = vmatpush1.msra.mxu0 0.0
    %1013 = vmatprep.subr.mxu0 0.0
    %1014 = vmatpush1.msra.mxu0 0.0
    %1015 = vmatprep.subr.mxu0 0.0
    %1016 = vmatpush1.msra.mxu0 0.0
    %1017 = vmatprep.subr.mxu0 0.0
    %1018 = vmatpush1.msra.mxu0 0.0
    %1019 = vmatprep.subr.mxu0 0.0
    %1020 = vmatpush1.msra.mxu0 0.0
    %1021 = vmatprep.subr.mxu0 0.0
    %1022 = vmatpush1.msra.mxu0 0.0
    %1023 = vmatprep.subr.mxu0 0.0
    %1024 = vmatpush1.msra.mxu0 0.0
    %1025 = vmatprep.subr.mxu0 0.0
    %1026 = vmatpush1.msra.mxu0 0.0
    %1027 = vmatprep.subr.mxu0 0.0
    %1028 = vmatpush1.msra.mxu0 0.0
    %1029 = vmatprep.subr.mxu0 0.0
    %1030 = vmatpush1.msra.mxu0 0.0
    %1031 = vmatprep.subr.mxu0 0.0
    %1032 = vmatpush1.msra.mxu0 0.0
    %1033 = vmatprep.subr.mxu0 0.0
    %1034 = vmatpush1.msra.mxu0 0.0
    %1035 = vmatprep.subr.mxu0 0.0
    %1036 = vmatpush1.msra.mxu0 0.0
    %1037 = vmatprep.mubr.f32.mxu0 0.0
    %1038 = vmatmul.mubr.f32.gmra.mrb[0].mxu0 %v971
    %v1039 = vpop.f32.mrb[0].mxu0
    %v1040 = vadd.f32 %v41, %v1039
    %v1041 = vpop.f32.mrb[0].mxu0
    %1042 = vdwg.mxu0
    %v1044 = vsel %vm124, %v964, 0
    %1046 = vmatprep.subr.mxu0 0.0
    %1047 = vmatpush1.msra.mxu0 %v32
    %1048 = vmatprep.subr.mxu0 0.0
    %1049 = vmatpush1.msra.mxu0 %v33
    %1050 = vmatprep.subr.mxu0 0.0
    %1051 = vmatpush1.msra.mxu0 %v34
    %1052 = vmatprep.subr.mxu0 0.0
    %1053 = vmatpush1.msra.mxu0 %v35
    %1054 = vmatprep.subr.mxu0 0.0
    %1055 = vmatpush1.msra.mxu0 0.0
    %1056 = vmatprep.subr.mxu0 0.0
    %1057 = vmatpush1.msra.mxu0 0.0
    %1058 = vmatprep.subr.mxu0 0.0
    %1059 = vmatpush1.msra.mxu0 0.0
    %1060 = vmatprep.subr.mxu0 0.0
    %1061 = vmatpush1.msra.mxu0 0.0
    %1062 = vmatprep.subr.mxu0 0.0
    %1063 = vmatpush1.msra.mxu0 0.0
    %1064 = vmatprep.subr.mxu0 0.0
    %1065 = vmatpush1.msra.mxu0 0.0
    %1066 = vmatprep.subr.mxu0 0.0
    %1067 = vmatpush1.msra.mxu0 0.0
    %1068 = vmatprep.subr.mxu0 0.0
    %1069 = vmatpush1.msra.mxu0 0.0
    %1070 = vmatprep.subr.mxu0 0.0
    %1071 = vmatpush1.msra.mxu0 0.0
    %1072 = vmatprep.subr.mxu0 0.0
    %1073 = vmatpush1.msra.mxu0 0.0
    %1074 = vmatprep.subr.mxu0 0.0
    %1075 = vmatpush1.msra.mxu0 0.0
    %1076 = vmatprep.subr.mxu0 0.0
    %1077 = vmatpush1.msra.mxu0 0.0
    %1078 = vmatprep.subr.mxu0 0.0
    %1079 = vmatpush1.msra.mxu0 0.0
    %1080 = vmatprep.subr.mxu0 0.0
    %1081 = vmatpush1.msra.mxu0 0.0
    %1082 = vmatprep.subr.mxu0 0.0
    %1083 = vmatpush1.msra.mxu0 0.0
    %1084 = vmatprep.subr.mxu0 0.0
    %1085 = vmatpush1.msra.mxu0 0.0
    %1086 = vmatprep.subr.mxu0 0.0
    %1087 = vmatpush1.msra.mxu0 0.0
    %1088 = vmatprep.subr.mxu0 0.0
    %1089 = vmatpush1.msra.mxu0 0.0
    %1090 = vmatprep.subr.mxu0 0.0
    %1091 = vmatpush1.msra.mxu0 0.0
    %1092 = vmatprep.subr.mxu0 0.0
    %1093 = vmatpush1.msra.mxu0 0.0
    %1094 = vmatprep.subr.mxu0 0.0
    %1095 = vmatpush1.msra.mxu0 0.0
    %1096 = vmatprep.subr.mxu0 0.0
    %1097 = vmatpush1.msra.mxu0 0.0
    %1098 = vmatprep.subr.mxu0 0.0
    %1099 = vmatpush1.msra.mxu0 0.0
    %1100 = vmatprep.subr.mxu0 0.0
    %1101 = vmatpush1.msra.mxu0 0.0
    %1102 = vmatprep.subr.mxu0 0.0
    %1103 = vmatpush1.msra.mxu0 0.0
    %1104 = vmatprep.subr.mxu0 0.0
    %1105 = vmatpush1.msra.mxu0 0.0
    %1106 = vmatprep.subr.mxu0 0.0
    %1107 = vmatpush1.msra.mxu0 0.0
    %1108 = vmatprep.subr.mxu0 0.0
    %1109 = vmatpush1.msra.mxu0 0.0
    %1110 = vmatprep.mubr.f32.mxu0 0.0
    %1111 = vmatmul.mubr.f32.gmra.mrb[0].mxu0 %v1044
    %v1112 = vpop.f32.mrb[0].mxu0
    %v1113 = vadd.f32 0.0, %v1112
    %v1114 = vpop.f32.mrb[0].mxu0
    %1115 = vdwg.mxu0
    %v1116 = vadd.f32 %v1040, %v1113
    %v1117 = vtanh.pop %v1116
    %v1118 = vld [vmem:[%s0 + $0x7] sm:$0x1]
    %v1119 = vld [vmem:[%s0 + $0xf] sm:$0x1]
    %v1122 = vrot.slane %v1119, 7
    %v1123 = vsel %vm49, %v1122, %v1118
    %v1124 = vsel %vm51, %v1123, 0
    %1126 = vmatprep.subr.mxu0 0.0
    %1127 = vmatpush1.msra.mxu0 %v30
    %1128 = vmatprep.subr.mxu0 0.0
    %1129 = vmatpush1.msra.mxu0 %v31
    %1130 = vmatprep.subr.mxu0 0.0
    %1131 = vmatpush1.msra.mxu0 0.0
    %1132 = vmatprep.subr.mxu0 0.0
    %1133 = vmatpush1.msra.mxu0 0.0
    %1134 = vmatprep.subr.mxu0 0.0
    %1135 = vmatpush1.msra.mxu0 0.0
    %1136 = vmatprep.subr.mxu0 0.0
    %1137 = vmatpush1.msra.mxu0 0.0
    %1138 = vmatprep.subr.mxu0 0.0
    %1139 = vmatpush1.msra.mxu0 0.0
    %1140 = vmatprep.subr.mxu0 0.0
    %1141 = vmatpush1.msra.mxu0 0.0
    %1142 = vmatprep.subr.mxu0 0.0
    %1143 = vmatpush1.msra.mxu0 0.0
    %1144 = vmatprep.subr.mxu0 0.0
    %1145 = vmatpush1.msra.mxu0 0.0
    %1146 = vmatprep.subr.mxu0 0.0
    %1147 = vmatpush1.msra.mxu0 0.0
    %1148 = vmatprep.subr.mxu0 0.0
    %1149 = vmatpush1.msra.mxu0 0.0
    %1150 = vmatprep.subr.mxu0 0.0
    %1151 = vmatpush1.msra.mxu0 0.0
    %1152 = vmatprep.subr.mxu0 0.0
    %1153 = vmatpush1.msra.mxu0 0.0
    %1154 = vmatprep.subr.mxu0 0.0
    %1155 = vmatpush1.msra.mxu0 0.0
    %1156 = vmatprep.subr.mxu0 0.0
    %1157 = vmatpush1.msra.mxu0 0.0
    %1158 = vmatprep.subr.mxu0 0.0
    %1159 = vmatpush1.msra.mxu0 0.0
    %1160 = vmatprep.subr.mxu0 0.0
    %1161 = vmatpush1.msra.mxu0 0.0
    %1162 = vmatprep.subr.mxu0 0.0
    %1163 = vmatpush1.msra.mxu0 0.0
    %1164 = vmatprep.subr.mxu0 0.0
    %1165 = vmatpush1.msra.mxu0 0.0
    %1166 = vmatprep.subr.mxu0 0.0
    %1167 = vmatpush1.msra.mxu0 0.0
    %1168 = vmatprep.subr.mxu0 0.0
    %1169 = vmatpush1.msra.mxu0 0.0
    %1170 = vmatprep.subr.mxu0 0.0
    %1171 = vmatpush1.msra.mxu0 0.0
    %1172 = vmatprep.subr.mxu0 0.0
    %1173 = vmatpush1.msra.mxu0 0.0
    %1174 = vmatprep.subr.mxu0 0.0
    %1175 = vmatpush1.msra.mxu0 0.0
    %1176 = vmatprep.subr.mxu0 0.0
    %1177 = vmatpush1.msra.mxu0 0.0
    %1178 = vmatprep.subr.mxu0 0.0
    %1179 = vmatpush1.msra.mxu0 0.0
    %1180 = vmatprep.subr.mxu0 0.0
    %1181 = vmatpush1.msra.mxu0 0.0
    %1182 = vmatprep.subr.mxu0 0.0
    %1183 = vmatpush1.msra.mxu0 0.0
    %1184 = vmatprep.subr.mxu0 0.0
    %1185 = vmatpush1.msra.mxu0 0.0
    %1186 = vmatprep.subr.mxu0 0.0
    %1187 = vmatpush1.msra.mxu0 0.0
    %1188 = vmatprep.subr.mxu0 0.0
    %1189 = vmatpush1.msra.mxu0 0.0
    %1190 = vmatprep.mubr.f32.mxu0 0.0
    %1191 = vmatmul.mubr.f32.gmra.mrb[0].mxu0 %v1124
    %v1192 = vpop.f32.mrb[0].mxu0
    %v1193 = vadd.f32 %v41, %v1192
    %v1194 = vpop.f32.mrb[0].mxu0
    %1195 = vdwg.mxu0
    %v1197 = vsel %vm124, %v1117, 0
    %1199 = vmatprep.subr.mxu0 0.0
    %1200 = vmatpush1.msra.mxu0 %v32
    %1201 = vmatprep.subr.mxu0 0.0
    %1202 = vmatpush1.msra.mxu0 %v33
    %1203 = vmatprep.subr.mxu0 0.0
    %1204 = vmatpush1.msra.mxu0 %v34
    %1205 = vmatprep.subr.mxu0 0.0
    %1206 = vmatpush1.msra.mxu0 %v35
    %1207 = vmatprep.subr.mxu0 0.0
    %1208 = vmatpush1.msra.mxu0 0.0
    %1209 = vmatprep.subr.mxu0 0.0
    %1210 = vmatpush1.msra.mxu0 0.0
    %1211 = vmatprep.subr.mxu0 0.0
    %1212 = vmatpush1.msra.mxu0 0.0
    %1213 = vmatprep.subr.mxu0 0.0
    %1214 = vmatpush1.msra.mxu0 0.0
    %1215 = vmatprep.subr.mxu0 0.0
    %1216 = vmatpush1.msra.mxu0 0.0
    %1217 = vmatprep.subr.mxu0 0.0
    %1218 = vmatpush1.msra.mxu0 0.0
    %1219 = vmatprep.subr.mxu0 0.0
    %1220 = vmatpush1.msra.mxu0 0.0
    %1221 = vmatprep.subr.mxu0 0.0
    %1222 = vmatpush1.msra.mxu0 0.0
    %1223 = vmatprep.subr.mxu0 0.0
    %1224 = vmatpush1.msra.mxu0 0.0
    %1225 = vmatprep.subr.mxu0 0.0
    %1226 = vmatpush1.msra.mxu0 0.0
    %1227 = vmatprep.subr.mxu0 0.0
    %1228 = vmatpush1.msra.mxu0 0.0
    %1229 = vmatprep.subr.mxu0 0.0
    %1230 = vmatpush1.msra.mxu0 0.0
    %1231 = vmatprep.subr.mxu0 0.0
    %1232 = vmatpush1.msra.mxu0 0.0
    %1233 = vmatprep.subr.mxu0 0.0
    %1234 = vmatpush1.msra.mxu0 0.0
    %1235 = vmatprep.subr.mxu0 0.0
    %1236 = vmatpush1.msra.mxu0 0.0
    %1237 = vmatprep.subr.mxu0 0.0
    %1238 = vmatpush1.msra.mxu0 0.0
    %1239 = vmatprep.subr.mxu0 0.0
    %1240 = vmatpush1.msra.mxu0 0.0
    %1241 = vmatprep.subr.mxu0 0.0
    %1242 = vmatpush1.msra.mxu0 0.0
    %1243 = vmatprep.subr.mxu0 0.0
    %1244 = vmatpush1.msra.mxu0 0.0
    %1245 = vmatprep.subr.mxu0 0.0
    %1246 = vmatpush1.msra.mxu0 0.0
    %1247 = vmatprep.subr.mxu0 0.0
    %1248 = vmatpush1.msra.mxu0 0.0
    %1249 = vmatprep.subr.mxu0 0.0
    %1250 = vmatpush1.msra.mxu0 0.0
    %1251 = vmatprep.subr.mxu0 0.0
    %1252 = vmatpush1.msra.mxu0 0.0
    %1253 = vmatprep.subr.mxu0 0.0
    %1254 = vmatpush1.msra.mxu0 0.0
    %1255 = vmatprep.subr.mxu0 0.0
    %1256 = vmatpush1.msra.mxu0 0.0
    %1257 = vmatprep.subr.mxu0 0.0
    %1258 = vmatpush1.msra.mxu0 0.0
    %1259 = vmatprep.subr.mxu0 0.0
    %1260 = vmatpush1.msra.mxu0 0.0
    %1261 = vmatprep.subr.mxu0 0.0
    %1262 = vmatpush1.msra.mxu0 0.0
    %1263 = vmatprep.mubr.f32.mxu0 0.0
    %1264 = vmatmul.mubr.f32.gmra.mrb[0].mxu0 %v1197
    %v1265 = vpop.f32.mrb[0].mxu0
    %v1266 = vadd.f32 0.0, %v1265
    %v1267 = vpop.f32.mrb[0].mxu0
    %1268 = vdwg.mxu0
    %v1269 = vadd.f32 %v1193, %v1266
    %v1270 = vtanh.pop %v1269
    %vm1271 = vcmask 254976
    %1272 = vst.msk [vmem:[#allocation2] sm:$0x3] %vm1271, %v1270
    // Predicated region
    $region30: #{rnn_forward.1} parent=1 // pred_check
      %p1273 = pneg %p24
    $region31: #{rnn_forward.1} parent=1 // pred_check_branch
      %1275 = sbr.rel (%p1273) target = $region33
    $region32: #{rnn_forward.1} parent=1 // pred_region
      %v1276 = vld [vmem:[%s4] sm:$0xff]
      %v1277 = vld [vmem:[%s4 + $0x8] sm:$0xff]
      %v1278 = vld [vmem:[%s4 + $0x10] sm:$0xff]
      %v1279 = vld [vmem:[%s4 + $0x18] sm:$0xff]
      %v1280 = vld [vmem:[%s5] sm:$0x1]
      %v1282 = vlaneseq
      %v1283 = vshrl.u32 %v1282, 7
      %v1284 = vsub.s32 0, %v1283
      %v1285 = vrot.slane %v1280, %v1284
      %v1288 = vsel %vm124, %v1270, 0
      %1290 = vmatprep.subr.mxu0 0.0
      %1291 = vmatpush1.msra.mxu0 %v1276
      %1292 = vmatprep.subr.mxu0 0.0
      %1293 = vmatpush1.msra.mxu0 %v1277
      %1294 = vmatprep.subr.mxu0 0.0
      %1295 = vmatpush1.msra.mxu0 %v1278
      %1296 = vmatprep.subr.mxu0 0.0
      %1297 = vmatpush1.msra.mxu0 %v1279
      %1298 = vmatprep.subr.mxu0 0.0
      %1299 = vmatpush1.msra.mxu0 0.0
      %1300 = vmatprep.subr.mxu0 0.0
      %1301 = vmatpush1.msra.mxu0 0.0
      %1302 = vmatprep.subr.mxu0 0.0
      %1303 = vmatpush1.msra.mxu0 0.0
      %1304 = vmatprep.subr.mxu0 0.0
      %1305 = vmatpush1.msra.mxu0 0.0
      %1306 = vmatprep.subr.mxu0 0.0
      %1307 = vmatpush1.msra.mxu0 0.0
      %1308 = vmatprep.subr.mxu0 0.0
      %1309 = vmatpush1.msra.mxu0 0.0
      %1310 = vmatprep.subr.mxu0 0.0
      %1311 = vmatpush1.msra.mxu0 0.0
      %1312 = vmatprep.subr.mxu0 0.0
      %1313 = vmatpush1.msra.mxu0 0.0
      %1314 = vmatprep.subr.mxu0 0.0
      %1315 = vmatpush1.msra.mxu0 0.0
      %1316 = vmatprep.subr.mxu0 0.0
      %1317 = vmatpush1.msra.mxu0 0.0
      %1318 = vmatprep.subr.mxu0 0.0
      %1319 = vmatpush1.msra.mxu0 0.0
      %1320 = vmatprep.subr.mxu0 0.0
      %1321 = vmatpush1.msra.mxu0 0.0
      %1322 = vmatprep.subr.mxu0 0.0
      %1323 = vmatpush1.msra.mxu0 0.0
      %1324 = vmatprep.subr.mxu0 0.0
      %1325 = vmatpush1.msra.mxu0 0.0
      %1326 = vmatprep.subr.mxu0 0.0
      %1327 = vmatpush1.msra.mxu0 0.0
      %1328 = vmatprep.subr.mxu0 0.0
      %1329 = vmatpush1.msra.mxu0 0.0
      %1330 = vmatprep.subr.mxu0 0.0
      %1331 = vmatpush1.msra.mxu0 0.0
      %1332 = vmatprep.subr.mxu0 0.0
      %1333 = vmatpush1.msra.mxu0 0.0
      %1334 = vmatprep.subr.mxu0 0.0
      %1335 = vmatpush1.msra.mxu0 0.0
      %1336 = vmatprep.subr.mxu0 0.0
      %1337 = vmatpush1.msra.mxu0 0.0
      %1338 = vmatprep.subr.mxu0 0.0
      %1339 = vmatpush1.msra.mxu0 0.0
      %1340 = vmatprep.subr.mxu0 0.0
      %1341 = vmatpush1.msra.mxu0 0.0
      %1342 = vmatprep.subr.mxu0 0.0
      %1343 = vmatpush1.msra.mxu0 0.0
      %1344 = vmatprep.subr.mxu0 0.0
      %1345 = vmatpush1.msra.mxu0 0.0
      %1346 = vmatprep.subr.mxu0 0.0
      %1347 = vmatpush1.msra.mxu0 0.0
      %1348 = vmatprep.subr.mxu0 0.0
      %1349 = vmatpush1.msra.mxu0 0.0
      %1350 = vmatprep.subr.mxu0 0.0
      %1351 = vmatpush1.msra.mxu0 0.0
      %1352 = vmatprep.subr.mxu0 0.0
      %1353 = vmatpush1.msra.mxu0 0.0
      %1354 = vmatprep.mubr.f32.mxu0 0.0
      %1355 = vmatmul.mubr.f32.gmra.mrb[0].mxu0 %v1288
      %v1356 = vpop.f32.mrb[0].mxu0
      %v1357 = vadd.f32 %v1285, %v1356
      %v1358 = vpop.f32.mrb[0].mxu0
      %1359 = vdwg.mxu0
      %vm1360 = vcmask 58368
      %1361 = vst.msk [vmem:[#allocation3] sm:$0x3] %vm1360, %v1357
    $region33: #{rnn_forward.1} parent=1 // pred_fallthru
      _
    // Predicated region
    $region34: #{rnn_forward.1} parent=1 // pred_check
      _
    $region35: #{rnn_forward.1} parent=1 // pred_check_branch
      %1363 = sbr.rel (0) target = $region37
    $region36: #{rnn_forward.1} parent=1 // pred_region
      %s1365 = ssub.s32 32, 32
      %1366 = vsyncadd [#allocation4], %s1365
      %s1368 = sshll.u32 [#allocation3], 4
      %s1369 = int_to_ptr.vmem [resolvable:$true] %s1368
      %1371 = dma.vmem_to_hbm [thread:$0]  %s1369, 32, %s6, [#allocation4]
    $region37: #{rnn_forward.1} parent=1 // pred_fallthru
      _
    // Predicated region
    $region38: #{rnn_forward.1} parent=1 // pred_check
      _
    $region39: #{rnn_forward.1} parent=1 // pred_check_branch
      %1373 = sbr.rel (0) target = $region41
    $region40: #{rnn_forward.1} parent=1 // pred_region
      %1374 = dma.done [#allocation4], 32
    $region41: #{rnn_forward.1} parent=1 // pred_fallthru
      _
    %1375 = vsyncpa [#allocation4], 1

</llo_original>
